<compile_context>
chip_gen: v7x
topology: tpu7x:2x2x1
jax: 0.10.0
libtpu: 0.0.40
codegen_flags: <defaults>
</compile_context>

<pallas_src>
import functools
import math

import jax
import jax.numpy as jnp
from jax.experimental import pallas as pl
from jax.experimental.pallas import tpu as pltpu


def _round_up(x, m):
    return ((x + m - 1) // m) * m


def timestep_embedding(timesteps, dim, max_period=10000.0):
    """Sinusoidal timestep embedding, cos-then-sin ordering (guided-diffusion style)."""
    # TODO(synk): verify cos/sin ordering + odd-dim zero pad against the exact
    # `timestep_embedding` used by MLP_DIF_G_OLD (a swapped order silently changes results).
    half = dim // 2
    freqs = jnp.exp(-math.log(max_period) * jnp.arange(half, dtype=jnp.float32) / half)
    args = timesteps.astype(jnp.float32)[:, None] * freqs[None, :]
    emb = jnp.concatenate([jnp.cos(args), jnp.sin(args)], axis=-1)
    if dim % 2:
        emb = jnp.concatenate([emb, jnp.zeros_like(emb[:, :1])], axis=-1)
    return emb


def _mlp_dif_g_kernel(
    t_emb_ref, noise_ref, ctx_ref,
    w_te0_ref, b_te0_ref, w_te2_ref, b_te2_ref,
    w_enc0n_ref, w_enc0e_ref, b_enc0_ref,
    w_enc2_ref, b_enc2_ref,
    w_dec0h_ref, w_dec0c_ref, b_dec0_ref,
    w_dec2_ref, b_dec2_ref,
    out_ref,
    *, compute_dtype,
):
    cd = compute_dtype

    def dot(a, w_ref):
        # bf16 MXU matmul, f32 accumulation.
        return jnp.dot(a.astype(cd), w_ref[...], preferred_element_type=jnp.float32)

    def leaky(z):  # LeakyReLU(0.2) in f32
        return jnp.where(z >= 0, z, 0.2 * z)

    # ---- time_embed: Linear -> SiLU -> Linear ----
    z = dot(t_emb_ref[...], w_te0_ref) + b_te0_ref[...]
    # SiLU: exp and approximate reciprocal both ride the EUP slot (VALU stays free).
    z = z * pl.reciprocal(1.0 + jnp.exp(-z), approx=True)
    emb = dot(z, w_te2_ref) + b_te2_ref[...]

    # ---- encoder on cat(noise, emb): concat fused via split weight row-blocks ----
    # (kept as two dots per review: staging a VMEM concat would only halve MXU
    #  drains at tiny K and adds masked sub-128-lane scratch stores)
    z = leaky(dot(noise_ref[...], w_enc0n_ref) + dot(emb, w_enc0e_ref) + b_enc0_ref[...])
    h = leaky(dot(z, w_enc2_ref) + b_enc2_ref[...])

    # ---- decoder on cat(h, context): concat fused via split weight row-blocks ----
    z = leaky(dot(h, w_dec0h_ref) + dot(ctx_ref[...], w_dec0c_ref) + b_dec0_ref[...])
    z = dot(z, w_dec2_ref) + b_dec2_ref[...]
    out_ref[...] = jnp.maximum(z, 0.0).astype(out_ref.dtype)   # final ReLU


def prepare_weights(params, *, nz, ngh, compute_dtype=jnp.bfloat16, lane=128):
    """One-time weight preprocessing, hoisted out of the forward path:
    bf16 casts, concat-fusing row splits, (1, D) bias reshapes, and zero-padding of
    the final projection to a lane-dense (multiple-of-128) output width."""
    cd, f32 = compute_dtype, jnp.float32
    res = params["w_dec2"].shape[1]
    res_pad = _round_up(res, lane)

    w_dec2, b_dec2 = params["w_dec2"], params["b_dec2"]
    if res_pad != res:
        w_dec2 = jnp.pad(w_dec2, ((0, 0), (0, res_pad - res)))
        b_dec2 = jnp.pad(b_dec2, ((0, res_pad - res),))

    wb = (
        params["w_te0"].astype(cd),  params["b_te0"].reshape(1, -1).astype(f32),
        params["w_te2"].astype(cd),  params["b_te2"].reshape(1, -1).astype(f32),
        params["w_enc0"][:nz].astype(cd),        # rows that multiply `noise`
        params["w_enc0"][nz:].astype(cd),        # rows that multiply `emb`
        params["b_enc0"].reshape(1, -1).astype(f32),
        params["w_enc2"].astype(cd), params["b_enc2"].reshape(1, -1).astype(f32),
        params["w_dec0"][:ngh].astype(cd),       # rows that multiply `h`
        params["w_dec0"][ngh:].astype(cd),       # rows that multiply `context`
        params["b_dec0"].reshape(1, -1).astype(f32),
        w_dec2.astype(cd), b_dec2.reshape(1, -1).astype(f32),
    )
    meta = dict(nz=nz, ngh=ngh, ted=params["w_te0"].shape[1],
                att=params["w_dec0"].shape[0] - ngh, res=res, res_pad=res_pad,
                compute_dtype=cd)
    return jax.block_until_ready(wb), meta


def _pick_tile(batch):
    # Generation-aware default batch tile:
    #  * large batches: 256 rows (fills v6e/v7x 2x256 MXU, multiple of 128 for v5e's
    #    4x128 MXU, multiple of 16 so bf16 vregs are packed full);
    #  * small batches: one grid step over the whole (padded) batch, since the
    #    ~0.35 us per-grid-step pipeline overhead dominates any MXU-fill argument.
    if batch >= 512:
        return 256
    return _round_up(max(batch, 16), 16)


def mlp_dif_g_forward(noise, timesteps, context, weights, meta, *, tm=None):
    cd = meta["compute_dtype"]
    nz, ngh, att = meta["nz"], meta["ngh"], meta["att"]
    res, res_pad, ted = meta["res"], meta["res_pad"], meta["ted"]

    if noise.ndim == 3:      # (B, 1, nz) -> (B, nz); explicit axis so B==1 survives
        noise = jnp.squeeze(noise, axis=1)
    if context.ndim == 3:
        context = jnp.squeeze(context, axis=1)
    B = noise.shape[0]

    if tm is None:
        tm = _pick_tile(B)
    b_pad = _round_up(B, tm)
    if b_pad // tm > 1 and (b_pad // tm) % 2:
        b_pad += tm          # keep the parallel grid even so v7x's 2 TCs stay balanced
    grid_len = b_pad // tm

    # TODO(synk): t_emb (tiny sinusoidal features) stays in plain JAX rather than
    # in-kernel sin/cos; it is handed to the kernel in bf16 so it costs one small
    # DMA stream per grid step.
    t_emb = timestep_embedding(timesteps, ngh)

    def pad_rows(a):
        return a if b_pad == B else jnp.pad(a, ((0, b_pad - B), (0, 0)))

    acts = (pad_rows(t_emb).astype(cd), pad_rows(noise).astype(cd),
            pad_rows(context).astype(cd))

    act_specs = [
        pl.BlockSpec((tm, ngh), lambda i: (i, 0)),   # t_emb
        pl.BlockSpec((tm, nz), lambda i: (i, 0)),    # noise
        pl.BlockSpec((tm, att), lambda i: (i, 0)),   # context
    ]

    flops = 2 * b_pad * (ngh * ted + ted * ted + (nz + ted) * ngh
                         + ngh * ngh + (ngh + att) * ngh + ngh * res_pad)
    bytes_accessed = (sum(int(a.size) * a.dtype.itemsize for a in acts)
                      + sum(int(w.size) * w.dtype.itemsize for w in weights)
                      + b_pad * res_pad * 4)
    cost = pl.CostEstimate(flops=flops, transcendentals=b_pad * ted,
                           bytes_accessed=bytes_accessed)

    kernel = functools.partial(_mlp_dif_g_kernel, compute_dtype=cd)

    def run(single_buffer_weights):
        if single_buffer_weights:
            # Resident weights never change block index -> single-buffer them so
            # default double-buffering doesn't double the weight VMEM footprint
            # (critical headroom on v7x's 64 MiB VMEM at large ngh).
            wb_specs = [pl.BlockSpec(w.shape, lambda i: (0, 0),
                                     pipeline_mode=pl.Buffered(1))
                        for w in weights]
        else:
            wb_specs = [pl.BlockSpec(w.shape, lambda i: (0, 0)) for w in weights]
        out = pl.pallas_call(
            kernel,
            out_shape=jax.ShapeDtypeStruct((b_pad, res_pad), jnp.float32),
            grid=(grid_len,),
            in_specs=act_specs + wb_specs,
            out_specs=pl.BlockSpec((tm, res_pad), lambda i: (i, 0)),
            compiler_params=pltpu.CompilerParams(
                dimension_semantics=("parallel",),
                # 48 MiB is safe on every generation (v7x has 64 MiB physical).
                # TODO(synk): at large ngh raise toward ~100 MiB on v5e/v6e (128 MiB
                # physical) and only on v7x fall back to a K-reduction grid axis.
                vmem_limit_bytes=48 * 1024 * 1024,
            ),
            cost_estimate=cost,
        )(*acts, *weights)
        return jax.block_until_ready(out)

    try:
        out = run(True)
    except Exception:
        # Fallback for jax versions where pipeline_mode isn't plumbed through
        # pallas_call's auto-pipeliner.
        out = run(False)

    return out[:B, :res]


if __name__ == "__main__":
    # Small synthetic "opt": nz=16, ngh=32, attSize=8, resSize=16.
    nz, ngh, attSize, resSize = 16, 32, 8, 16
    ted = nz * 4

    keys = jax.random.split(jax.random.PRNGKey(0), 16)

    def init_linear(kw, fan_in, fan_out):
        # weights_init: Linear -> N(0, 0.02) weights, zero bias; stored (in, out)
        # (transposed vs. PyTorch's (out, in)).
        return (0.02 * jax.random.normal(kw, (fan_in, fan_out), dtype=jnp.float32),
                jnp.zeros((fan_out,), dtype=jnp.float32))

    params = {}
    params["w_te0"], params["b_te0"] = init_linear(keys[3], ngh, ted)
    params["w_te2"], params["b_te2"] = init_linear(keys[4], ted, ted)
    params["w_enc0"], params["b_enc0"] = init_linear(keys[5], nz + ted, ngh)
    params["w_enc2"], params["b_enc2"] = init_linear(keys[6], ngh, ngh)
    params["w_dec0"], params["b_dec0"] = init_linear(keys[7], ngh + attSize, ngh)
    params["w_dec2"], params["b_dec2"] = init_linear(keys[8], ngh, resSize)

    # One-time weight preprocessing, hoisted out of the forward path.
    weights, meta = prepare_weights(params, nz=nz, ngh=ngh)

    # Reference in plain JAX with matched bf16 matmul operands / f32 accumulation.
    # TODO(synk): the PyTorch module runs the matmuls in f32; the bf16-operand MXU
    # path here is a deliberate perf choice, validated against a bf16-matched reference.
    cdr = jnp.bfloat16

    def reference_forward(noise, timesteps, context):
        def lin(a, w, b):
            return jnp.dot(a.astype(cdr), w.astype(cdr),
                           preferred_element_type=jnp.float32) + b

        def leaky(z):
            return jnp.where(z >= 0, z, 0.2 * z)

        n2, c2 = jnp.squeeze(noise, axis=1), jnp.squeeze(context, axis=1)
        t_emb = timestep_embedding(timesteps, ngh)
        z = lin(t_emb, params["w_te0"], params["b_te0"])
        z = z * jax.nn.sigmoid(z)
        emb = lin(z, params["w_te2"], params["b_te2"])
        z = leaky(lin(jnp.concatenate([n2, emb], axis=1),
                      params["w_enc0"], params["b_enc0"]))
        h = leaky(lin(z, params["w_enc2"], params["b_enc2"]))
        z = leaky(lin(jnp.concatenate([h, c2], axis=1),
                      params["w_dec0"], params["b_dec0"]))
        return jnp.maximum(lin(z, params["w_dec2"], params["b_dec2"]), 0.0)

    # Case 1: ragged small batch (B=12 -> zero-padded single-step grid of 16 rows).
    B1 = 12
    noise1 = jax.random.normal(keys[0], (B1, 1, nz), dtype=jnp.float32)
    context1 = jax.random.normal(keys[1], (B1, 1, attSize), dtype=jnp.float32)
    ts1 = jax.random.randint(keys[2], (B1,), 0, 1000).astype(jnp.float32)

    out1 = jax.block_until_ready(mlp_dif_g_forward(noise1, ts1, context1, weights, meta))
    ref1 = reference_forward(noise1, ts1, context1)
    assert out1.shape == (B1, resSize), out1.shape
    assert jnp.allclose(out1, ref1, atol=3e-3, rtol=3e-2), \
        float(jnp.max(jnp.abs(out1 - ref1)))

    # Case 2: multi-step grid (B=40, tm=16 -> padded to 64 rows, even 4-step
    # "parallel" grid exercising the tiled / megacore-shardable path).
    B2 = 40
    noise2 = jax.random.normal(keys[9], (B2, 1, nz), dtype=jnp.float32)
    context2 = jax.random.normal(keys[10], (B2, 1, attSize), dtype=jnp.float32)
    ts2 = jax.random.randint(keys[11], (B2,), 0, 1000).astype(jnp.float32)

    out2 = jax.block_until_ready(
        mlp_dif_g_forward(noise2, ts2, context2, weights, meta, tm=16))
    ref2 = reference_forward(noise2, ts2, context2)
    assert out2.shape == (B2, resSize), out2.shape
    assert jnp.allclose(out2, ref2, atol=3e-3, rtol=3e-2), \
        float(jnp.max(jnp.abs(out2 - ref2)))

    print("KERNEL_OK")
</pallas_src>

<mosaic_0001>
module attributes {stable_mosaic.version = 11 : i64} {
  func.func @_mlp_dif_g_kernel(%arg0: i32, %arg1: memref<16x32xbf16, #tpu.memory_space<vmem>>, %arg2: memref<16x16xbf16, #tpu.memory_space<vmem>>, %arg3: memref<16x8xbf16, #tpu.memory_space<vmem>>, %arg4: memref<32x64xbf16, #tpu.memory_space<vmem>>, %arg5: memref<1x64xf32, #tpu.memory_space<vmem>>, %arg6: memref<64x64xbf16, #tpu.memory_space<vmem>>, %arg7: memref<1x64xf32, #tpu.memory_space<vmem>>, %arg8: memref<16x32xbf16, #tpu.memory_space<vmem>>, %arg9: memref<64x32xbf16, #tpu.memory_space<vmem>>, %arg10: memref<1x32xf32, #tpu.memory_space<vmem>>, %arg11: memref<32x32xbf16, #tpu.memory_space<vmem>>, %arg12: memref<1x32xf32, #tpu.memory_space<vmem>>, %arg13: memref<32x32xbf16, #tpu.memory_space<vmem>>, %arg14: memref<8x32xbf16, #tpu.memory_space<vmem>>, %arg15: memref<1x32xf32, #tpu.memory_space<vmem>>, %arg16: memref<32x128xbf16, #tpu.memory_space<vmem>>, %arg17: memref<1x128xf32, #tpu.memory_space<vmem>>, %arg18: memref<16x128xf32, #tpu.memory_space<vmem>>) attributes {dimension_semantics = [#tpu.dimension_semantics<parallel>], iteration_bounds = array<i64: 1>, scalar_prefetch = 0 : i64, scratch_operands = 0 : i64, tpu.core_type = #tpu.core_type<tc>, window_params = [{transform_indices = @transform_0, window_bounds = array<i64: 16, 32>}, {transform_indices = @transform_1, window_bounds = array<i64: 16, 16>}, {transform_indices = @transform_2, window_bounds = array<i64: 16, 8>}, {pipeline_mode = #tpu.pipeline_mode<synchronous>, transform_indices = @transform_3, window_bounds = array<i64: 32, 64>}, {pipeline_mode = #tpu.pipeline_mode<synchronous>, transform_indices = @transform_4, window_bounds = array<i64: 1, 64>}, {pipeline_mode = #tpu.pipeline_mode<synchronous>, transform_indices = @transform_5, window_bounds = array<i64: 64, 64>}, {pipeline_mode = #tpu.pipeline_mode<synchronous>, transform_indices = @transform_6, window_bounds = array<i64: 1, 64>}, {pipeline_mode = #tpu.pipeline_mode<synchronous>, transform_indices = @transform_7, window_bounds = array<i64: 16, 32>}, {pipeline_mode = #tpu.pipeline_mode<synchronous>, transform_indices = @transform_8, window_bounds = array<i64: 64, 32>}, {pipeline_mode = #tpu.pipeline_mode<synchronous>, transform_indices = @transform_9, window_bounds = array<i64: 1, 32>}, {pipeline_mode = #tpu.pipeline_mode<synchronous>, transform_indices = @transform_10, window_bounds = array<i64: 32, 32>}, {pipeline_mode = #tpu.pipeline_mode<synchronous>, transform_indices = @transform_11, window_bounds = array<i64: 1, 32>}, {pipeline_mode = #tpu.pipeline_mode<synchronous>, transform_indices = @transform_12, window_bounds = array<i64: 32, 32>}, {pipeline_mode = #tpu.pipeline_mode<synchronous>, transform_indices = @transform_13, window_bounds = array<i64: 8, 32>}, {pipeline_mode = #tpu.pipeline_mode<synchronous>, transform_indices = @transform_14, window_bounds = array<i64: 1, 32>}, {pipeline_mode = #tpu.pipeline_mode<synchronous>, transform_indices = @transform_15, window_bounds = array<i64: 32, 128>}, {pipeline_mode = #tpu.pipeline_mode<synchronous>, transform_indices = @transform_16, window_bounds = array<i64: 1, 128>}, {transform_indices = @transform_17, window_bounds = array<i64: 16, 128>}]} {
    %c0 = arith.constant 0 : index
    %c0_0 = arith.constant 0 : index
    %0 = vector.load %arg1[%c0, %c0_0] : memref<16x32xbf16, #tpu.memory_space<vmem>>, vector<16x32xbf16>
    %c0_1 = arith.constant 0 : index
    %c0_2 = arith.constant 0 : index
    %1 = vector.load %arg4[%c0_1, %c0_2] : memref<32x64xbf16, #tpu.memory_space<vmem>>, vector<32x64xbf16>
    %cst = arith.constant dense<0.000000e+00> : vector<16x64xf32>
    %2 = tpu.matmul %0, %1, %cst {dimension_numbers = #tpu.dot_dimension_numbers<[1], [0], [0], [1], [0, 0, 1, 1], [], []>} : vector<16x32xbf16>, vector<32x64xbf16>, vector<16x64xf32> -> vector<16x64xf32>
    %c0_3 = arith.constant 0 : index
    %c0_4 = arith.constant 0 : index
    %3 = vector.load %arg5[%c0_3, %c0_4] : memref<1x64xf32, #tpu.memory_space<vmem>>, vector<1x64xf32>
    %4 = vector.broadcast %3 : vector<1x64xf32> to vector<16x64xf32>
    %5 = arith.addf %2, %4 : vector<16x64xf32>
    %cst_5 = arith.constant 0.000000e+00 : f32
    %6 = vector.broadcast %cst_5 : f32 to vector<16x64xf32>
    %7 = arith.subf %6, %5 : vector<16x64xf32>
    %8 = math.exp %7 : vector<16x64xf32>
    %cst_6 = arith.constant 1.000000e+00 : f32
    %9 = vector.broadcast %cst_6 : f32 to vector<16x64xf32>
    %10 = arith.addf %9, %8 : vector<16x64xf32>
    %11 = tpu.reciprocal %10 {approx = true} : vector<16x64xf32> -> vector<16x64xf32>
    %12 = arith.mulf %5, %11 : vector<16x64xf32>
    %13 = arith.truncf %12 : vector<16x64xf32> to vector<16x64xbf16>
    %c0_7 = arith.constant 0 : index
    %c0_8 = arith.constant 0 : index
    %14 = vector.load %arg6[%c0_7, %c0_8] : memref<64x64xbf16, #tpu.memory_space<vmem>>, vector<64x64xbf16>
    %cst_9 = arith.constant dense<0.000000e+00> : vector<16x64xf32>
    %15 = tpu.matmul %13, %14, %cst_9 {dimension_numbers = #tpu.dot_dimension_numbers<[1], [0], [0], [1], [0, 0, 1, 1], [], []>} : vector<16x64xbf16>, vector<64x64xbf16>, vector<16x64xf32> -> vector<16x64xf32>
    %c0_10 = arith.constant 0 : index
    %c0_11 = arith.constant 0 : index
    %16 = vector.load %arg7[%c0_10, %c0_11] : memref<1x64xf32, #tpu.memory_space<vmem>>, vector<1x64xf32>
    %17 = vector.broadcast %16 : vector<1x64xf32> to vector<16x64xf32>
    %18 = arith.addf %15, %17 : vector<16x64xf32>
    %c0_12 = arith.constant 0 : index
    %c0_13 = arith.constant 0 : index
    %19 = vector.load %arg2[%c0_12, %c0_13] : memref<16x16xbf16, #tpu.memory_space<vmem>>, vector<16x16xbf16>
    %c0_14 = arith.constant 0 : index
    %c0_15 = arith.constant 0 : index
    %20 = vector.load %arg8[%c0_14, %c0_15] : memref<16x32xbf16, #tpu.memory_space<vmem>>, vector<16x32xbf16>
    %cst_16 = arith.constant dense<0.000000e+00> : vector<16x32xf32>
    %21 = tpu.matmul %19, %20, %cst_16 {dimension_numbers = #tpu.dot_dimension_numbers<[1], [0], [0], [1], [0, 0, 1, 1], [], []>} : vector<16x16xbf16>, vector<16x32xbf16>, vector<16x32xf32> -> vector<16x32xf32>
    %22 = arith.truncf %18 : vector<16x64xf32> to vector<16x64xbf16>
    %c0_17 = arith.constant 0 : index
    %c0_18 = arith.constant 0 : index
    %23 = vector.load %arg9[%c0_17, %c0_18] : memref<64x32xbf16, #tpu.memory_space<vmem>>, vector<64x32xbf16>
    %cst_19 = arith.constant dense<0.000000e+00> : vector<16x32xf32>
    %24 = tpu.matmul %22, %23, %cst_19 {dimension_numbers = #tpu.dot_dimension_numbers<[1], [0], [0], [1], [0, 0, 1, 1], [], []>} : vector<16x64xbf16>, vector<64x32xbf16>, vector<16x32xf32> -> vector<16x32xf32>
    %25 = arith.addf %21, %24 : vector<16x32xf32>
    %c0_20 = arith.constant 0 : index
    %c0_21 = arith.constant 0 : index
    %26 = vector.load %arg10[%c0_20, %c0_21] : memref<1x32xf32, #tpu.memory_space<vmem>>, vector<1x32xf32>
    %27 = vector.broadcast %26 : vector<1x32xf32> to vector<16x32xf32>
    %28 = arith.addf %25, %27 : vector<16x32xf32>
    %cst_22 = arith.constant 0.000000e+00 : f32
    %29 = vector.broadcast %cst_22 : f32 to vector<16x32xf32>
    %30 = arith.cmpf oge, %28, %29 : vector<16x32xf32>
    %cst_23 = arith.constant 2.000000e-01 : f32
    %31 = vector.broadcast %cst_23 : f32 to vector<16x32xf32>
    %32 = arith.mulf %31, %28 : vector<16x32xf32>
    %33 = arith.select %30, %28, %32 : vector<16x32xi1>, vector<16x32xf32>
    %34 = arith.truncf %33 : vector<16x32xf32> to vector<16x32xbf16>
    %c0_24 = arith.constant 0 : index
    %c0_25 = arith.constant 0 : index
    %35 = vector.load %arg11[%c0_24, %c0_25] : memref<32x32xbf16, #tpu.memory_space<vmem>>, vector<32x32xbf16>
    %cst_26 = arith.constant dense<0.000000e+00> : vector<16x32xf32>
    %36 = tpu.matmul %34, %35, %cst_26 {dimension_numbers = #tpu.dot_dimension_numbers<[1], [0], [0], [1], [0, 0, 1, 1], [], []>} : vector<16x32xbf16>, vector<32x32xbf16>, vector<16x32xf32> -> vector<16x32xf32>
    %c0_27 = arith.constant 0 : index
    %c0_28 = arith.constant 0 : index
    %37 = vector.load %arg12[%c0_27, %c0_28] : memref<1x32xf32, #tpu.memory_space<vmem>>, vector<1x32xf32>
    %38 = vector.broadcast %37 : vector<1x32xf32> to vector<16x32xf32>
    %39 = arith.addf %36, %38 : vector<16x32xf32>
    %cst_29 = arith.constant 0.000000e+00 : f32
    %40 = vector.broadcast %cst_29 : f32 to vector<16x32xf32>
    %41 = arith.cmpf oge, %39, %40 : vector<16x32xf32>
    %cst_30 = arith.constant 2.000000e-01 : f32
    %42 = vector.broadcast %cst_30 : f32 to vector<16x32xf32>
    %43 = arith.mulf %42, %39 : vector<16x32xf32>
    %44 = arith.select %41, %39, %43 : vector<16x32xi1>, vector<16x32xf32>
    %45 = arith.truncf %44 : vector<16x32xf32> to vector<16x32xbf16>
    %c0_31 = arith.constant 0 : index
    %c0_32 = arith.constant 0 : index
    %46 = vector.load %arg13[%c0_31, %c0_32] : memref<32x32xbf16, #tpu.memory_space<vmem>>, vector<32x32xbf16>
    %cst_33 = arith.constant dense<0.000000e+00> : vector<16x32xf32>
    %47 = tpu.matmul %45, %46, %cst_33 {dimension_numbers = #tpu.dot_dimension_numbers<[1], [0], [0], [1], [0, 0, 1, 1], [], []>} : vector<16x32xbf16>, vector<32x32xbf16>, vector<16x32xf32> -> vector<16x32xf32>
    %c0_34 = arith.constant 0 : index
    %c0_35 = arith.constant 0 : index
    %48 = vector.load %arg3[%c0_34, %c0_35] : memref<16x8xbf16, #tpu.memory_space<vmem>>, vector<16x8xbf16>
    %c0_36 = arith.constant 0 : index
    %c0_37 = arith.constant 0 : index
    %49 = vector.load %arg14[%c0_36, %c0_37] : memref<8x32xbf16, #tpu.memory_space<vmem>>, vector<8x32xbf16>
    %cst_38 = arith.constant dense<0.000000e+00> : vector<16x32xf32>
    %50 = tpu.matmul %48, %49, %cst_38 {dimension_numbers = #tpu.dot_dimension_numbers<[1], [0], [0], [1], [0, 0, 1, 1], [], []>} : vector<16x8xbf16>, vector<8x32xbf16>, vector<16x32xf32> -> vector<16x32xf32>
    %51 = arith.addf %47, %50 : vector<16x32xf32>
    %c0_39 = arith.constant 0 : index
    %c0_40 = arith.constant 0 : index
    %52 = vector.load %arg15[%c0_39, %c0_40] : memref<1x32xf32, #tpu.memory_space<vmem>>, vector<1x32xf32>
    %53 = vector.broadcast %52 : vector<1x32xf32> to vector<16x32xf32>
    %54 = arith.addf %51, %53 : vector<16x32xf32>
    %cst_41 = arith.constant 0.000000e+00 : f32
    %55 = vector.broadcast %cst_41 : f32 to vector<16x32xf32>
    %56 = arith.cmpf oge, %54, %55 : vector<16x32xf32>
    %cst_42 = arith.constant 2.000000e-01 : f32
    %57 = vector.broadcast %cst_42 : f32 to vector<16x32xf32>
    %58 = arith.mulf %57, %54 : vector<16x32xf32>
    %59 = arith.select %56, %54, %58 : vector<16x32xi1>, vector<16x32xf32>
    %60 = arith.truncf %59 : vector<16x32xf32> to vector<16x32xbf16>
    %c0_43 = arith.constant 0 : index
    %c0_44 = arith.constant 0 : index
    %61 = vector.load %arg16[%c0_43, %c0_44] : memref<32x128xbf16, #tpu.memory_space<vmem>>, vector<32x128xbf16>
    %cst_45 = arith.constant dense<0.000000e+00> : vector<16x128xf32>
    %62 = tpu.matmul %60, %61, %cst_45 {dimension_numbers = #tpu.dot_dimension_numbers<[1], [0], [0], [1], [0, 0, 1, 1], [], []>} : vector<16x32xbf16>, vector<32x128xbf16>, vector<16x128xf32> -> vector<16x128xf32>
    %c0_46 = arith.constant 0 : index
    %c0_47 = arith.constant 0 : index
    %63 = vector.load %arg17[%c0_46, %c0_47] : memref<1x128xf32, #tpu.memory_space<vmem>>, vector<1x128xf32>
    %64 = vector.broadcast %63 : vector<1x128xf32> to vector<16x128xf32>
    %65 = arith.addf %62, %64 : vector<16x128xf32>
    %cst_48 = arith.constant 0.000000e+00 : f32
    %66 = vector.broadcast %cst_48 : f32 to vector<16x128xf32>
    %67 = arith.maximumf %65, %66 : vector<16x128xf32>
    %c0_49 = arith.constant 0 : index
    %c0_50 = arith.constant 0 : index
    %68 = vector.load %arg18[%c0_49, %c0_50] : memref<16x128xf32, #tpu.memory_space<vmem>>, vector<16x128xf32>
    tpu.vector_store %arg18[%c0_49, %c0_50], %67 {strides = array<i32>} : memref<16x128xf32, #tpu.memory_space<vmem>>, vector<16x128xf32>,
    return
  }
  func.func @transform_0(%arg0: i32) -> (i32, i32) {
    %c0_i32 = arith.constant 0 : i32
    %c0_i32_0 = arith.constant 0 : i32
    return %arg0, %c0_i32 : i32, i32
  }
  func.func @transform_1(%arg0: i32) -> (i32, i32) {
    %c0_i32 = arith.constant 0 : i32
    %c0_i32_0 = arith.constant 0 : i32
    return %arg0, %c0_i32 : i32, i32
  }
  func.func @transform_2(%arg0: i32) -> (i32, i32) {
    %c0_i32 = arith.constant 0 : i32
    %c0_i32_0 = arith.constant 0 : i32
    return %arg0, %c0_i32 : i32, i32
  }
  func.func @transform_3(%arg0: i32) -> (i32, i32) {
    %c0_i32 = arith.constant 0 : i32
    %c0_i32_0 = arith.constant 0 : i32
    %c0_i32_1 = arith.constant 0 : i32
    return %c0_i32, %c0_i32_0 : i32, i32
  }
  func.func @transform_4(%arg0: i32) -> (i32, i32) {
    %c0_i32 = arith.constant 0 : i32
    %c0_i32_0 = arith.constant 0 : i32
    %c0_i32_1 = arith.constant 0 : i32
    return %c0_i32, %c0_i32_0 : i32, i32
  }
  func.func @transform_5(%arg0: i32) -> (i32, i32) {
    %c0_i32 = arith.constant 0 : i32
    %c0_i32_0 = arith.constant 0 : i32
    %c0_i32_1 = arith.constant 0 : i32
    return %c0_i32, %c0_i32_0 : i32, i32
  }
  func.func @transform_6(%arg0: i32) -> (i32, i32) {
    %c0_i32 = arith.constant 0 : i32
    %c0_i32_0 = arith.constant 0 : i32
    %c0_i32_1 = arith.constant 0 : i32
    return %c0_i32, %c0_i32_0 : i32, i32
  }
  func.func @transform_7(%arg0: i32) -> (i32, i32) {
    %c0_i32 = arith.constant 0 : i32
    %c0_i32_0 = arith.constant 0 : i32
    %c0_i32_1 = arith.constant 0 : i32
    return %c0_i32, %c0_i32_0 : i32, i32
  }
  func.func @transform_8(%arg0: i32) -> (i32, i32) {
    %c0_i32 = arith.constant 0 : i32
    %c0_i32_0 = arith.constant 0 : i32
    %c0_i32_1 = arith.constant 0 : i32
    return %c0_i32, %c0_i32_0 : i32, i32
  }
  func.func @transform_9(%arg0: i32) -> (i32, i32) {
    %c0_i32 = arith.constant 0 : i32
    %c0_i32_0 = arith.constant 0 : i32
    %c0_i32_1 = arith.constant 0 : i32
    return %c0_i32, %c0_i32_0 : i32, i32
  }
  func.func @transform_10(%arg0: i32) -> (i32, i32) {
    %c0_i32 = arith.constant 0 : i32
    %c0_i32_0 = arith.constant 0 : i32
    %c0_i32_1 = arith.constant 0 : i32
    return %c0_i32, %c0_i32_0 : i32, i32
  }
  func.func @transform_11(%arg0: i32) -> (i32, i32) {
    %c0_i32 = arith.constant 0 : i32
    %c0_i32_0 = arith.constant 0 : i32
    %c0_i32_1 = arith.constant 0 : i32
    return %c0_i32, %c0_i32_0 : i32, i32
  }
  func.func @transform_12(%arg0: i32) -> (i32, i32) {
    %c0_i32 = arith.constant 0 : i32
    %c0_i32_0 = arith.constant 0 : i32
    %c0_i32_1 = arith.constant 0 : i32
    return %c0_i32, %c0_i32_0 : i32, i32
  }
  func.func @transform_13(%arg0: i32) -> (i32, i32) {
    %c0_i32 = arith.constant 0 : i32
    %c0_i32_0 = arith.constant 0 : i32
    %c0_i32_1 = arith.constant 0 : i32
    return %c0_i32, %c0_i32_0 : i32, i32
  }
  func.func @transform_14(%arg0: i32) -> (i32, i32) {
    %c0_i32 = arith.constant 0 : i32
    %c0_i32_0 = arith.constant 0 : i32
    %c0_i32_1 = arith.constant 0 : i32
    return %c0_i32, %c0_i32_0 : i32, i32
  }
  func.func @transform_15(%arg0: i32) -> (i32, i32) {
    %c0_i32 = arith.constant 0 : i32
    %c0_i32_0 = arith.constant 0 : i32
    %c0_i32_1 = arith.constant 0 : i32
    return %c0_i32, %c0_i32_0 : i32, i32
  }
  func.func @transform_16(%arg0: i32) -> (i32, i32) {
    %c0_i32 = arith.constant 0 : i32
    %c0_i32_0 = arith.constant 0 : i32
    %c0_i32_1 = arith.constant 0 : i32
    return %c0_i32, %c0_i32_0 : i32, i32
  }
  func.func @transform_17(%arg0: i32) -> (i32, i32) {
    %c0_i32 = arith.constant 0 : i32
    %c0_i32_0 = arith.constant 0 : i32
    return %arg0, %c0_i32 : i32, i32
  }
}

module attributes {stable_mosaic.version = 11 : i64} {
  func.func @_mlp_dif_g_kernel(%arg0: i32, %arg1: memref<16x32xbf16, #tpu.memory_space<vmem>>, %arg2: memref<16x16xbf16, #tpu.memory_space<vmem>>, %arg3: memref<16x8xbf16, #tpu.memory_space<vmem>>, %arg4: memref<32x64xbf16, #tpu.memory_space<vmem>>, %arg5: memref<1x64xf32, #tpu.memory_space<vmem>>, %arg6: memref<64x64xbf16, #tpu.memory_space<vmem>>, %arg7: memref<1x64xf32, #tpu.memory_space<vmem>>, %arg8: memref<16x32xbf16, #tpu.memory_space<vmem>>, %arg9: memref<64x32xbf16, #tpu.memory_space<vmem>>, %arg10: memref<1x32xf32, #tpu.memory_space<vmem>>, %arg11: memref<32x32xbf16, #tpu.memory_space<vmem>>, %arg12: memref<1x32xf32, #tpu.memory_space<vmem>>, %arg13: memref<32x32xbf16, #tpu.memory_space<vmem>>, %arg14: memref<8x32xbf16, #tpu.memory_space<vmem>>, %arg15: memref<1x32xf32, #tpu.memory_space<vmem>>, %arg16: memref<32x128xbf16, #tpu.memory_space<vmem>>, %arg17: memref<1x128xf32, #tpu.memory_space<vmem>>, %arg18: memref<16x128xf32, #tpu.memory_space<vmem>>) attributes {dimension_semantics = [#tpu.dimension_semantics<parallel>], iteration_bounds = array<i64: 1>, scalar_prefetch = 0 : i64, scratch_operands = 0 : i64, tpu.core_type = #tpu.core_type<tc>, window_params = [{transform_indices = @transform_0, window_bounds = array<i64: 16, 32>}, {transform_indices = @transform_1, window_bounds = array<i64: 16, 16>}, {transform_indices = @transform_2, window_bounds = array<i64: 16, 8>}, {pipeline_mode = #tpu.pipeline_mode<synchronous>, transform_indices = @transform_3, window_bounds = array<i64: 32, 64>}, {pipeline_mode = #tpu.pipeline_mode<synchronous>, transform_indices = @transform_4, window_bounds = array<i64: 1, 64>}, {pipeline_mode = #tpu.pipeline_mode<synchronous>, transform_indices = @transform_5, window_bounds = array<i64: 64, 64>}, {pipeline_mode = #tpu.pipeline_mode<synchronous>, transform_indices = @transform_6, window_bounds = array<i64: 1, 64>}, {pipeline_mode = #tpu.pipeline_mode<synchronous>, transform_indices = @transform_7, window_bounds = array<i64: 16, 32>}, {pipeline_mode = #tpu.pipeline_mode<synchronous>, transform_indices = @transform_8, window_bounds = array<i64: 64, 32>}, {pipeline_mode = #tpu.pipeline_mode<synchronous>, transform_indices = @transform_9, window_bounds = array<i64: 1, 32>}, {pipeline_mode = #tpu.pipeline_mode<synchronous>, transform_indices = @transform_10, window_bounds = array<i64: 32, 32>}, {pipeline_mode = #tpu.pipeline_mode<synchronous>, transform_indices = @transform_11, window_bounds = array<i64: 1, 32>}, {pipeline_mode = #tpu.pipeline_mode<synchronous>, transform_indices = @transform_12, window_bounds = array<i64: 32, 32>}, {pipeline_mode = #tpu.pipeline_mode<synchronous>, transform_indices = @transform_13, window_bounds = array<i64: 8, 32>}, {pipeline_mode = #tpu.pipeline_mode<synchronous>, transform_indices = @transform_14, window_bounds = array<i64: 1, 32>}, {pipeline_mode = #tpu.pipeline_mode<synchronous>, transform_indices = @transform_15, window_bounds = array<i64: 32, 128>}, {pipeline_mode = #tpu.pipeline_mode<synchronous>, transform_indices = @transform_16, window_bounds = array<i64: 1, 128>}, {transform_indices = @transform_17, window_bounds = array<i64: 16, 128>}]} {
    %c0 = arith.constant 0 : index
    %c0_0 = arith.constant 0 : index
    %0 = vector.load %arg1[%c0, %c0_0] : memref<16x32xbf16, #tpu.memory_space<vmem>>, vector<16x32xbf16>
    %c0_1 = arith.constant 0 : index
    %c0_2 = arith.constant 0 : index
    %1 = vector.load %arg4[%c0_1, %c0_2] : memref<32x64xbf16, #tpu.memory_space<vmem>>, vector<32x64xbf16>
    %cst = arith.constant dense<0.000000e+00> : vector<16x64xf32>
    %2 = tpu.matmul %0, %1, %cst {dimension_numbers = #tpu.dot_dimension_numbers<[1], [0], [0], [1], [0, 0, 1, 1], [], []>} : vector<16x32xbf16>, vector<32x64xbf16>, vector<16x64xf32> -> vector<16x64xf32>
    %c0_3 = arith.constant 0 : index
    %c0_4 = arith.constant 0 : index
    %3 = vector.load %arg5[%c0_3, %c0_4] : memref<1x64xf32, #tpu.memory_space<vmem>>, vector<1x64xf32>
    %4 = vector.broadcast %3 : vector<1x64xf32> to vector<16x64xf32>
    %5 = arith.addf %2, %4 : vector<16x64xf32>
    %cst_5 = arith.constant 0.000000e+00 : f32
    %6 = vector.broadcast %cst_5 : f32 to vector<16x64xf32>
    %7 = arith.subf %6, %5 : vector<16x64xf32>
    %8 = math.exp %7 : vector<16x64xf32>
    %cst_6 = arith.constant 1.000000e+00 : f32
    %9 = vector.broadcast %cst_6 : f32 to vector<16x64xf32>
    %10 = arith.addf %9, %8 : vector<16x64xf32>
    %11 = tpu.reciprocal %10 {approx = true} : vector<16x64xf32> -> vector<16x64xf32>
    %12 = arith.mulf %5, %11 : vector<16x64xf32>
    %13 = arith.truncf %12 : vector<16x64xf32> to vector<16x64xbf16>
    %c0_7 = arith.constant 0 : index
    %c0_8 = arith.constant 0 : index
    %14 = vector.load %arg6[%c0_7, %c0_8] : memref<64x64xbf16, #tpu.memory_space<vmem>>, vector<64x64xbf16>
    %cst_9 = arith.constant dense<0.000000e+00> : vector<16x64xf32>
    %15 = tpu.matmul %13, %14, %cst_9 {dimension_numbers = #tpu.dot_dimension_numbers<[1], [0], [0], [1], [0, 0, 1, 1], [], []>} : vector<16x64xbf16>, vector<64x64xbf16>, vector<16x64xf32> -> vector<16x64xf32>
    %c0_10 = arith.constant 0 : index
    %c0_11 = arith.constant 0 : index
    %16 = vector.load %arg7[%c0_10, %c0_11] : memref<1x64xf32, #tpu.memory_space<vmem>>, vector<1x64xf32>
    %17 = vector.broadcast %16 : vector<1x64xf32> to vector<16x64xf32>
    %18 = arith.addf %15, %17 : vector<16x64xf32>
    %c0_12 = arith.constant 0 : index
    %c0_13 = arith.constant 0 : index
    %19 = vector.load %arg2[%c0_12, %c0_13] : memref<16x16xbf16, #tpu.memory_space<vmem>>, vector<16x16xbf16>
    %c0_14 = arith.constant 0 : index
    %c0_15 = arith.constant 0 : index
    %20 = vector.load %arg8[%c0_14, %c0_15] : memref<16x32xbf16, #tpu.memory_space<vmem>>, vector<16x32xbf16>
    %cst_16 = arith.constant dense<0.000000e+00> : vector<16x32xf32>
    %21 = tpu.matmul %19, %20, %cst_16 {dimension_numbers = #tpu.dot_dimension_numbers<[1], [0], [0], [1], [0, 0, 1, 1], [], []>} : vector<16x16xbf16>, vector<16x32xbf16>, vector<16x32xf32> -> vector<16x32xf32>
    %22 = arith.truncf %18 : vector<16x64xf32> to vector<16x64xbf16>
    %c0_17 = arith.constant 0 : index
    %c0_18 = arith.constant 0 : index
    %23 = vector.load %arg9[%c0_17, %c0_18] : memref<64x32xbf16, #tpu.memory_space<vmem>>, vector<64x32xbf16>
    %cst_19 = arith.constant dense<0.000000e+00> : vector<16x32xf32>
    %24 = tpu.matmul %22, %23, %cst_19 {dimension_numbers = #tpu.dot_dimension_numbers<[1], [0], [0], [1], [0, 0, 1, 1], [], []>} : vector<16x64xbf16>, vector<64x32xbf16>, vector<16x32xf32> -> vector<16x32xf32>
    %25 = arith.addf %21, %24 : vector<16x32xf32>
    %c0_20 = arith.constant 0 : index
    %c0_21 = arith.constant 0 : index
    %26 = vector.load %arg10[%c0_20, %c0_21] : memref<1x32xf32, #tpu.memory_space<vmem>>, vector<1x32xf32>
    %27 = vector.broadcast %26 : vector<1x32xf32> to vector<16x32xf32>
    %28 = arith.addf %25, %27 : vector<16x32xf32>
    %cst_22 = arith.constant 0.000000e+00 : f32
    %29 = vector.broadcast %cst_22 : f32 to vector<16x32xf32>
    %30 = arith.cmpf oge, %28, %29 : vector<16x32xf32>
    %cst_23 = arith.constant 2.000000e-01 : f32
    %31 = vector.broadcast %cst_23 : f32 to vector<16x32xf32>
    %32 = arith.mulf %31, %28 : vector<16x32xf32>
    %33 = arith.select %30, %28, %32 : vector<16x32xi1>, vector<16x32xf32>
    %34 = arith.truncf %33 : vector<16x32xf32> to vector<16x32xbf16>
    %c0_24 = arith.constant 0 : index
    %c0_25 = arith.constant 0 : index
    %35 = vector.load %arg11[%c0_24, %c0_25] : memref<32x32xbf16, #tpu.memory_space<vmem>>, vector<32x32xbf16>
    %cst_26 = arith.constant dense<0.000000e+00> : vector<16x32xf32>
    %36 = tpu.matmul %34, %35, %cst_26 {dimension_numbers = #tpu.dot_dimension_numbers<[1], [0], [0], [1], [0, 0, 1, 1], [], []>} : vector<16x32xbf16>, vector<32x32xbf16>, vector<16x32xf32> -> vector<16x32xf32>
    %c0_27 = arith.constant 0 : index
    %c0_28 = arith.constant 0 : index
    %37 = vector.load %arg12[%c0_27, %c0_28] : memref<1x32xf32, #tpu.memory_space<vmem>>, vector<1x32xf32>
    %38 = vector.broadcast %37 : vector<1x32xf32> to vector<16x32xf32>
    %39 = arith.addf %36, %38 : vector<16x32xf32>
    %cst_29 = arith.constant 0.000000e+00 : f32
    %40 = vector.broadcast %cst_29 : f32 to vector<16x32xf32>
    %41 = arith.cmpf oge, %39, %40 : vector<16x32xf32>
    %cst_30 = arith.constant 2.000000e-01 : f32
    %42 = vector.broadcast %cst_30 : f32 to vector<16x32xf32>
    %43 = arith.mulf %42, %39 : vector<16x32xf32>
    %44 = arith.select %41, %39, %43 : vector<16x32xi1>, vector<16x32xf32>
    %45 = arith.truncf %44 : vector<16x32xf32> to vector<16x32xbf16>
    %c0_31 = arith.constant 0 : index
    %c0_32 = arith.constant 0 : index
    %46 = vector.load %arg13[%c0_31, %c0_32] : memref<32x32xbf16, #tpu.memory_space<vmem>>, vector<32x32xbf16>
    %cst_33 = arith.constant dense<0.000000e+00> : vector<16x32xf32>
    %47 = tpu.matmul %45, %46, %cst_33 {dimension_numbers = #tpu.dot_dimension_numbers<[1], [0], [0], [1], [0, 0, 1, 1], [], []>} : vector<16x32xbf16>, vector<32x32xbf16>, vector<16x32xf32> -> vector<16x32xf32>
    %c0_34 = arith.constant 0 : index
    %c0_35 = arith.constant 0 : index
    %48 = vector.load %arg3[%c0_34, %c0_35] : memref<16x8xbf16, #tpu.memory_space<vmem>>, vector<16x8xbf16>
    %c0_36 = arith.constant 0 : index
    %c0_37 = arith.constant 0 : index
    %49 = vector.load %arg14[%c0_36, %c0_37] : memref<8x32xbf16, #tpu.memory_space<vmem>>, vector<8x32xbf16>
    %cst_38 = arith.constant dense<0.000000e+00> : vector<16x32xf32>
    %50 = tpu.matmul %48, %49, %cst_38 {dimension_numbers = #tpu.dot_dimension_numbers<[1], [0], [0], [1], [0, 0, 1, 1], [], []>} : vector<16x8xbf16>, vector<8x32xbf16>, vector<16x32xf32> -> vector<16x32xf32>
    %51 = arith.addf %47, %50 : vector<16x32xf32>
    %c0_39 = arith.constant 0 : index
    %c0_40 = arith.constant 0 : index
    %52 = vector.load %arg15[%c0_39, %c0_40] : memref<1x32xf32, #tpu.memory_space<vmem>>, vector<1x32xf32>
    %53 = vector.broadcast %52 : vector<1x32xf32> to vector<16x32xf32>
    %54 = arith.addf %51, %53 : vector<16x32xf32>
    %cst_41 = arith.constant 0.000000e+00 : f32
    %55 = vector.broadcast %cst_41 : f32 to vector<16x32xf32>
    %56 = arith.cmpf oge, %54, %55 : vector<16x32xf32>
    %cst_42 = arith.constant 2.000000e-01 : f32
    %57 = vector.broadcast %cst_42 : f32 to vector<16x32xf32>
    %58 = arith.mulf %57, %54 : vector<16x32xf32>
    %59 = arith.select %56, %54, %58 : vector<16x32xi1>, vector<16x32xf32>
    %60 = arith.truncf %59 : vector<16x32xf32> to vector<16x32xbf16>
    %c0_43 = arith.constant 0 : index
    %c0_44 = arith.constant 0 : index
    %61 = vector.load %arg16[%c0_43, %c0_44] : memref<32x128xbf16, #tpu.memory_space<vmem>>, vector<32x128xbf16>
    %cst_45 = arith.constant dense<0.000000e+00> : vector<16x128xf32>
    %62 = tpu.matmul %60, %61, %cst_45 {dimension_numbers = #tpu.dot_dimension_numbers<[1], [0], [0], [1], [0, 0, 1, 1], [], []>} : vector<16x32xbf16>, vector<32x128xbf16>, vector<16x128xf32> -> vector<16x128xf32>
    %c0_46 = arith.constant 0 : index
    %c0_47 = arith.constant 0 : index
    %63 = vector.load %arg17[%c0_46, %c0_47] : memref<1x128xf32, #tpu.memory_space<vmem>>, vector<1x128xf32>
    %64 = vector.broadcast %63 : vector<1x128xf32> to vector<16x128xf32>
    %65 = arith.addf %62, %64 : vector<16x128xf32>
    %cst_48 = arith.constant 0.000000e+00 : f32
    %66 = vector.broadcast %cst_48 : f32 to vector<16x128xf32>
    %67 = arith.maximumf %65, %66 : vector<16x128xf32>
    %c0_49 = arith.constant 0 : index
    %c0_50 = arith.constant 0 : index
    %68 = vector.load %arg18[%c0_49, %c0_50] : memref<16x128xf32, #tpu.memory_space<vmem>>, vector<16x128xf32>
    tpu.vector_store %arg18[%c0_49, %c0_50], %67 {strides = array<i32>} : memref<16x128xf32, #tpu.memory_space<vmem>>, vector<16x128xf32>,
    return
  }
  func.func @transform_0(%arg0: i32) -> (i32, i32) {
    %c0_i32 = arith.constant 0 : i32
    %c0_i32_0 = arith.constant 0 : i32
    return %arg0, %c0_i32 : i32, i32
  }
  func.func @transform_1(%arg0: i32) -> (i32, i32) {
    %c0_i32 = arith.constant 0 : i32
    %c0_i32_0 = arith.constant 0 : i32
    return %arg0, %c0_i32 : i32, i32
  }
  func.func @transform_2(%arg0: i32) -> (i32, i32) {
    %c0_i32 = arith.constant 0 : i32
    %c0_i32_0 = arith.constant 0 : i32
    return %arg0, %c0_i32 : i32, i32
  }
  func.func @transform_3(%arg0: i32) -> (i32, i32) {
    %c0_i32 = arith.constant 0 : i32
    %c0_i32_0 = arith.constant 0 : i32
    %c0_i32_1 = arith.constant 0 : i32
    return %c0_i32, %c0_i32_0 : i32, i32
  }
  func.func @transform_4(%arg0: i32) -> (i32, i32) {
    %c0_i32 = arith.constant 0 : i32
    %c0_i32_0 = arith.constant 0 : i32
    %c0_i32_1 = arith.constant 0 : i32
    return %c0_i32, %c0_i32_0 : i32, i32
  }
  func.func @transform_5(%arg0: i32) -> (i32, i32) {
    %c0_i32 = arith.constant 0 : i32
    %c0_i32_0 = arith.constant 0 : i32
    %c0_i32_1 = arith.constant 0 : i32
    return %c0_i32, %c0_i32_0 : i32, i32
  }
  func.func @transform_6(%arg0: i32) -> (i32, i32) {
    %c0_i32 = arith.constant 0 : i32
    %c0_i32_0 = arith.constant 0 : i32
    %c0_i32_1 = arith.constant 0 : i32
    return %c0_i32, %c0_i32_0 : i32, i32
  }
  func.func @transform_7(%arg0: i32) -> (i32, i32) {
    %c0_i32 = arith.constant 0 : i32
    %c0_i32_0 = arith.constant 0 : i32
    %c0_i32_1 = arith.constant 0 : i32
    return %c0_i32, %c0_i32_0 : i32, i32
  }
  func.func @transform_8(%arg0: i32) -> (i32, i32) {
    %c0_i32 = arith.constant 0 : i32
    %c0_i32_0 = arith.constant 0 : i32
    %c0_i32_1 = arith.constant 0 : i32
    return %c0_i32, %c0_i32_0 : i32, i32
  }
  func.func @transform_9(%arg0: i32) -> (i32, i32) {
    %c0_i32 = arith.constant 0 : i32
    %c0_i32_0 = arith.constant 0 : i32
    %c0_i32_1 = arith.constant 0 : i32
    return %c0_i32, %c0_i32_0 : i32, i32
  }
  func.func @transform_10(%arg0: i32) -> (i32, i32) {
    %c0_i32 = arith.constant 0 : i32
    %c0_i32_0 = arith.constant 0 : i32
    %c0_i32_1 = arith.constant 0 : i32
    return %c0_i32, %c0_i32_0 : i32, i32
  }
  func.func @transform_11(%arg0: i32) -> (i32, i32) {
    %c0_i32 = arith.constant 0 : i32
    %c0_i32_0 = arith.constant 0 : i32
    %c0_i32_1 = arith.constant 0 : i32
    return %c0_i32, %c0_i32_0 : i32, i32
  }
  func.func @transform_12(%arg0: i32) -> (i32, i32) {
    %c0_i32 = arith.constant 0 : i32
    %c0_i32_0 = arith.constant 0 : i32
    %c0_i32_1 = arith.constant 0 : i32
    return %c0_i32, %c0_i32_0 : i32, i32
  }
  func.func @transform_13(%arg0: i32) -> (i32, i32) {
    %c0_i32 = arith.constant 0 : i32
    %c0_i32_0 = arith.constant 0 : i32
    %c0_i32_1 = arith.constant 0 : i32
    return %c0_i32, %c0_i32_0 : i32, i32
  }
  func.func @transform_14(%arg0: i32) -> (i32, i32) {
    %c0_i32 = arith.constant 0 : i32
    %c0_i32_0 = arith.constant 0 : i32
    %c0_i32_1 = arith.constant 0 : i32
    return %c0_i32, %c0_i32_0 : i32, i32
  }
  func.func @transform_15(%arg0: i32) -> (i32, i32) {
    %c0_i32 = arith.constant 0 : i32
    %c0_i32_0 = arith.constant 0 : i32
    %c0_i32_1 = arith.constant 0 : i32
    return %c0_i32, %c0_i32_0 : i32, i32
  }
  func.func @transform_16(%arg0: i32) -> (i32, i32) {
    %c0_i32 = arith.constant 0 : i32
    %c0_i32_0 = arith.constant 0 : i32
    %c0_i32_1 = arith.constant 0 : i32
    return %c0_i32, %c0_i32_0 : i32, i32
  }
  func.func @transform_17(%arg0: i32) -> (i32, i32) {
    %c0_i32 = arith.constant 0 : i32
    %c0_i32_0 = arith.constant 0 : i32
    return %arg0, %c0_i32 : i32, i32
  }
}

</mosaic_0001>

<llo_original>
// kernel: tpu_custom_call.1
$region0: #{tpu_custom_call.1}
  #allocation0 [shape = 'u32[]', space=smem, size = 0x4, offset = 0x4, fixed_abs, tag = 'smem constant byte address 0x4 - core index']
  #allocation1 [shape = 'u32[144,128]{1,0:T(1,128)}', space=vmem, size = 0x12000, scoped, tag = 'internal scratch']
  %s0 = inlined_call_operand.hbm [shape: bf16[16,32], index: 0, kind: input, shape index: {}]
  %s1 = inlined_call_operand.hbm [shape: bf16[16,16], index: 1, kind: input, shape index: {}]
  %s2 = inlined_call_operand.vmem [shape: bf16[16,8], index: 2, kind: input, shape index: {}]
  %s3 = inlined_call_operand.vmem [shape: bf16[32,64], index: 3, kind: input, shape index: {}]
  %s4 = inlined_call_operand.vmem [shape: f32[1,64], index: 4, kind: input, shape index: {}]
  %s5 = inlined_call_operand.vmem [shape: bf16[64,64], index: 5, kind: input, shape index: {}]
  %s6 = inlined_call_operand.hbm [shape: f32[1,64], index: 6, kind: input, shape index: {}]
  %s7 = inlined_call_operand.hbm [shape: bf16[16,32], index: 7, kind: input, shape index: {}]
  %s8 = inlined_call_operand.vmem [shape: bf16[64,32], index: 8, kind: input, shape index: {}]
  %s9 = inlined_call_operand.hbm [shape: f32[1,32], index: 9, kind: input, shape index: {}]
  %s10 = inlined_call_operand.vmem [shape: bf16[32,32], index: 10, kind: input, shape index: {}]
  %s11 = inlined_call_operand.hbm [shape: f32[1,32], index: 11, kind: input, shape index: {}]
  %s12 = inlined_call_operand.vmem [shape: bf16[32,32], index: 12, kind: input, shape index: {}]
  %s13 = inlined_call_operand.hbm [shape: bf16[8,32], index: 13, kind: input, shape index: {}]
  %s14 = inlined_call_operand.hbm [shape: f32[1,32], index: 14, kind: input, shape index: {}]
  %s15 = inlined_call_operand.vmem [shape: bf16[32,128], index: 15, kind: input, shape index: {}]
  %s16 = inlined_call_operand.vmem [shape: f32[1,128], index: 16, kind: input, shape index: {}]
  %s17 = inlined_call_operand.hbm [shape: f32[16,128], index: 17, kind: output, shape index: {}]
  %s18 = sld [smem:[#allocation0]]
  $region110: #{tpu_custom_call.1} parent=0
    _
  %s20 = ssub.s32 1, %s18
  %s21 = scalar_select 0, %s20, %s18
  $region1: #{tpu_custom_call.1} parent=0
    #allocation2 [shape = 'u8[4096]{0}', space=vmem, size = 0x1000, scoped, tag = 'input window, operand 0, single buffered']
    #allocation3 [shape = 's32[1]{0}', space=sflag, size = 0x4, scoped, tag = 'scoped memory for tpu_custom_call.1']
    #allocation4 [shape = 's32[1]{0}', space=sflag, size = 0x4, scoped, tag = 'scoped memory for tpu_custom_call.1']
    #allocation5 [shape = 'u8[4096]{0}', space=vmem, size = 0x1000, scoped, tag = 'input window, operand 1, single buffered']
    #allocation6 [shape = 's32[1]{0}', space=sflag, size = 0x4, scoped, tag = 'scoped memory for tpu_custom_call.1']
    #allocation7 [shape = 'u8[512]{0}', space=vmem, size = 0x400, scoped, tag = 'input window, operand 6, single buffered']
    #allocation8 [shape = 'u8[4096]{0}', space=vmem, size = 0x1000, scoped, tag = 'input window, operand 7, single buffered']
    #allocation9 [shape = 's32[1]{0}', space=sflag, size = 0x4, scoped, tag = 'scoped memory for tpu_custom_call.1']
    #allocation10 [shape = 'u8[512]{0}', space=vmem, size = 0x400, scoped, tag = 'input window, operand 9, single buffered']
    #allocation11 [shape = 'u8[512]{0}', space=vmem, size = 0x400, scoped, tag = 'input window, operand 11, single buffered']
    #allocation12 [shape = 's32[1]{0}', space=sflag, size = 0x4, scoped, tag = 'scoped memory for tpu_custom_call.1']
    #allocation13 [shape = 'u8[2048]{0}', space=vmem, size = 0x800, scoped, tag = 'input window, operand 13, single buffered']
    #allocation14 [shape = 'u8[512]{0}', space=vmem, size = 0x400, scoped, tag = 'input window, operand 14, single buffered']
    #allocation15 [shape = 's32[1]{0}', space=sflag, size = 0x4, scoped, tag = 'scoped memory for tpu_custom_call.1']
    #allocation16 [shape = 'u8[8192]{0}', space=vmem, size = 0x2000, scoped, tag = 'output window, operand 0, single buffered']
    %22 = vsyncpa [#allocation3], 0
    %23 = vsyncpa [#allocation6], 0
    %24 = vsyncpa [#allocation9], 0
    %25 = vsyncpa [#allocation12], 0
    %26 = vsyncpa [#allocation15], 0
    %27 = vsyncpa [#allocation4], 0
    // Predicated region
    $region2: #{tpu_custom_call.1} parent=1 // pred_check
      _
    $region3: #{tpu_custom_call.1} parent=1 // pred_check_branch
      %29 = sbr.rel (0) target = $region5
    $region4: #{tpu_custom_call.1} parent=1 // pred_region
      %s31 = ssub.s32 128, 128
      %32 = vsyncadd [#allocation3], %s31
      %s33 = sshll.u32 [#allocation2], 4
      %s34 = int_to_ptr.vmem [resolvable:$true] %s33
      %39 = dma.hbm_to_vmem [thread:$0]  %s0, 128, %s34, [#allocation3], 64, 64, 4
    $region5: #{tpu_custom_call.1} parent=1 // pred_fallthru
      _
    // Predicated region
    $region6: #{tpu_custom_call.1} parent=1 // pred_check
      _
    $region7: #{tpu_custom_call.1} parent=1 // pred_check_branch
      %41 = sbr.rel (0) target = $region9
    $region8: #{tpu_custom_call.1} parent=1 // pred_region
      %s43 = ssub.s32 128, 128
      %44 = vsyncadd [#allocation6], %s43
      %s45 = sshll.u32 [#allocation5], 4
      %s46 = int_to_ptr.vmem [resolvable:$true] %s45
      %51 = dma.hbm_to_vmem [thread:$0]  %s1, 128, %s46, [#allocation6], 64, 64, 4
    $region9: #{tpu_custom_call.1} parent=1 // pred_fallthru
      _
    // Predicated region
    $region10: #{tpu_custom_call.1} parent=1 // pred_check
      _
    $region11: #{tpu_custom_call.1} parent=1 // pred_check_branch
      %53 = sbr.rel (0) target = $region13
    $region12: #{tpu_custom_call.1} parent=1 // pred_region
      _
    $region13: #{tpu_custom_call.1} parent=1 // pred_fallthru
      _
    // Predicated region
    $region14: #{tpu_custom_call.1} parent=1 // pred_check
      _
    $region15: #{tpu_custom_call.1} parent=1 // pred_check_branch
      %55 = sbr.rel (0) target = $region17
    $region16: #{tpu_custom_call.1} parent=1 // pred_region
      _
    $region17: #{tpu_custom_call.1} parent=1 // pred_fallthru
      _
    // Predicated region
    $region18: #{tpu_custom_call.1} parent=1 // pred_check
      _
    $region19: #{tpu_custom_call.1} parent=1 // pred_check_branch
      %57 = sbr.rel (0) target = $region21
    $region20: #{tpu_custom_call.1} parent=1 // pred_region
      _
    $region21: #{tpu_custom_call.1} parent=1 // pred_fallthru
      _
    // Predicated region
    $region22: #{tpu_custom_call.1} parent=1 // pred_check
      _
    $region23: #{tpu_custom_call.1} parent=1 // pred_check_branch
      %59 = sbr.rel (0) target = $region25
    $region24: #{tpu_custom_call.1} parent=1 // pred_region
      _
    $region25: #{tpu_custom_call.1} parent=1 // pred_fallthru
      _
    // Predicated region
    $region26: #{tpu_custom_call.1} parent=1 // pred_check
      _
    $region27: #{tpu_custom_call.1} parent=1 // pred_check_branch
      %61 = sbr.rel (0) target = $region29
    $region28: #{tpu_custom_call.1} parent=1 // pred_region
      %s63 = ssub.s32 16, 16
      %64 = vsyncadd [#allocation6], %s63
      %s66 = sshll.u32 [#allocation7], 4
      %s67 = int_to_ptr.vmem [resolvable:$true] %s66
      %69 = dma.hbm_to_vmem [thread:$0]  %s6, 16, %s67, [#allocation6]
    $region29: #{tpu_custom_call.1} parent=1 // pred_fallthru
      _
    // Predicated region
    $region30: #{tpu_custom_call.1} parent=1 // pred_check
      _
    $region31: #{tpu_custom_call.1} parent=1 // pred_check_branch
      %71 = sbr.rel (0) target = $region33
    $region32: #{tpu_custom_call.1} parent=1 // pred_region
      %s73 = ssub.s32 128, 128
      %74 = vsyncadd [#allocation9], %s73
      %s75 = sshll.u32 [#allocation8], 4
      %s76 = int_to_ptr.vmem [resolvable:$true] %s75
      %81 = dma.hbm_to_vmem [thread:$0]  %s7, 128, %s76, [#allocation9], 64, 64, 4
    $region33: #{tpu_custom_call.1} parent=1 // pred_fallthru
      _
    // Predicated region
    $region34: #{tpu_custom_call.1} parent=1 // pred_check
      _
    $region35: #{tpu_custom_call.1} parent=1 // pred_check_branch
      %83 = sbr.rel (0) target = $region37
    $region36: #{tpu_custom_call.1} parent=1 // pred_region
      _
    $region37: #{tpu_custom_call.1} parent=1 // pred_fallthru
      _
    // Predicated region
    $region38: #{tpu_custom_call.1} parent=1 // pred_check
      _
    $region39: #{tpu_custom_call.1} parent=1 // pred_check_branch
      %85 = sbr.rel (0) target = $region41
    $region40: #{tpu_custom_call.1} parent=1 // pred_region
      %s87 = ssub.s32 16, 16
      %88 = vsyncadd [#allocation9], %s87
      %s90 = sshll.u32 [#allocation10], 4
      %s91 = int_to_ptr.vmem [resolvable:$true] %s90
      %93 = dma.hbm_to_vmem [thread:$0]  %s9, 16, %s91, [#allocation9]
    $region41: #{tpu_custom_call.1} parent=1 // pred_fallthru
      _
    // Predicated region
    $region42: #{tpu_custom_call.1} parent=1 // pred_check
      _
    $region43: #{tpu_custom_call.1} parent=1 // pred_check_branch
      %95 = sbr.rel (0) target = $region45
    $region44: #{tpu_custom_call.1} parent=1 // pred_region
      _
    $region45: #{tpu_custom_call.1} parent=1 // pred_fallthru
      _
    // Predicated region
    $region46: #{tpu_custom_call.1} parent=1 // pred_check
      _
    $region47: #{tpu_custom_call.1} parent=1 // pred_check_branch
      %97 = sbr.rel (0) target = $region49
    $region48: #{tpu_custom_call.1} parent=1 // pred_region
      %s99 = ssub.s32 16, 16
      %100 = vsyncadd [#allocation12], %s99
      %s102 = sshll.u32 [#allocation11], 4
      %s103 = int_to_ptr.vmem [resolvable:$true] %s102
      %105 = dma.hbm_to_vmem [thread:$0]  %s11, 16, %s103, [#allocation12]
    $region49: #{tpu_custom_call.1} parent=1 // pred_fallthru
      _
    // Predicated region
    $region50: #{tpu_custom_call.1} parent=1 // pred_check
      _
    $region51: #{tpu_custom_call.1} parent=1 // pred_check_branch
      %107 = sbr.rel (0) target = $region53
    $region52: #{tpu_custom_call.1} parent=1 // pred_region
      _
    $region53: #{tpu_custom_call.1} parent=1 // pred_fallthru
      _
    // Predicated region
    $region54: #{tpu_custom_call.1} parent=1 // pred_check
      _
    $region55: #{tpu_custom_call.1} parent=1 // pred_check_branch
      %109 = sbr.rel (0) target = $region57
    $region56: #{tpu_custom_call.1} parent=1 // pred_region
      %s111 = ssub.s32 64, 64
      %112 = vsyncadd [#allocation12], %s111
      %s114 = sshll.u32 [#allocation13], 4
      %s115 = int_to_ptr.vmem [resolvable:$true] %s114
      %117 = dma.hbm_to_vmem [thread:$0]  %s13, 64, %s115, [#allocation12]
    $region57: #{tpu_custom_call.1} parent=1 // pred_fallthru
      _
    // Predicated region
    $region58: #{tpu_custom_call.1} parent=1 // pred_check
      _
    $region59: #{tpu_custom_call.1} parent=1 // pred_check_branch
      %119 = sbr.rel (0) target = $region61
    $region60: #{tpu_custom_call.1} parent=1 // pred_region
      %s121 = ssub.s32 16, 16
      %122 = vsyncadd [#allocation15], %s121
      %s124 = sshll.u32 [#allocation14], 4
      %s125 = int_to_ptr.vmem [resolvable:$true] %s124
      %127 = dma.hbm_to_vmem [thread:$0]  %s14, 16, %s125, [#allocation15]
    $region61: #{tpu_custom_call.1} parent=1 // pred_fallthru
      _
    // Predicated region
    $region62: #{tpu_custom_call.1} parent=1 // pred_check
      _
    $region63: #{tpu_custom_call.1} parent=1 // pred_check_branch
      %129 = sbr.rel (0) target = $region65
    $region64: #{tpu_custom_call.1} parent=1 // pred_region
      _
    $region65: #{tpu_custom_call.1} parent=1 // pred_fallthru
      _
    // Predicated region
    $region66: #{tpu_custom_call.1} parent=1 // pred_check
      _
    $region67: #{tpu_custom_call.1} parent=1 // pred_check_branch
      %131 = sbr.rel (0) target = $region69
    $region68: #{tpu_custom_call.1} parent=1 // pred_region
      _
    $region69: #{tpu_custom_call.1} parent=1 // pred_fallthru
      _
    // Predicated region
    $region70: #{tpu_custom_call.1} parent=1 // pred_check
      _
    $region71: #{tpu_custom_call.1} parent=1 // pred_check_branch
      %133 = sbr.rel (0) target = $region73
    $region72: #{tpu_custom_call.1} parent=1 // pred_region
      %134 = dma.done [#allocation3], 128
    $region73: #{tpu_custom_call.1} parent=1 // pred_fallthru
      _
    // Predicated region
    $region74: #{tpu_custom_call.1} parent=1 // pred_check
      _
    $region75: #{tpu_custom_call.1} parent=1 // pred_check_branch
      %136 = sbr.rel (0) target = $region77
    $region76: #{tpu_custom_call.1} parent=1 // pred_region
      %137 = dma.done [#allocation6], 128
    $region77: #{tpu_custom_call.1} parent=1 // pred_fallthru
      _
    // Predicated region
    $region78: #{tpu_custom_call.1} parent=1 // pred_check
      _
    $region79: #{tpu_custom_call.1} parent=1 // pred_check_branch
      %139 = sbr.rel (0) target = $region81
    $region80: #{tpu_custom_call.1} parent=1 // pred_region
      %140 = dma.done [#allocation6], 16
    $region81: #{tpu_custom_call.1} parent=1 // pred_fallthru
      _
    // Predicated region
    $region82: #{tpu_custom_call.1} parent=1 // pred_check
      _
    $region83: #{tpu_custom_call.1} parent=1 // pred_check_branch
      %142 = sbr.rel (0) target = $region85
    $region84: #{tpu_custom_call.1} parent=1 // pred_region
      %143 = dma.done [#allocation9], 128
    $region85: #{tpu_custom_call.1} parent=1 // pred_fallthru
      _
    // Predicated region
    $region86: #{tpu_custom_call.1} parent=1 // pred_check
      _
    $region87: #{tpu_custom_call.1} parent=1 // pred_check_branch
      %145 = sbr.rel (0) target = $region89
    $region88: #{tpu_custom_call.1} parent=1 // pred_region
      %146 = dma.done [#allocation9], 16
    $region89: #{tpu_custom_call.1} parent=1 // pred_fallthru
      _
    // Predicated region
    $region90: #{tpu_custom_call.1} parent=1 // pred_check
      _
    $region91: #{tpu_custom_call.1} parent=1 // pred_check_branch
      %148 = sbr.rel (0) target = $region93
    $region92: #{tpu_custom_call.1} parent=1 // pred_region
      %149 = dma.done [#allocation12], 16
    $region93: #{tpu_custom_call.1} parent=1 // pred_fallthru
      _
    // Predicated region
    $region94: #{tpu_custom_call.1} parent=1 // pred_check
      _
    $region95: #{tpu_custom_call.1} parent=1 // pred_check_branch
      %151 = sbr.rel (0) target = $region97
    $region96: #{tpu_custom_call.1} parent=1 // pred_region
      %152 = dma.done [#allocation12], 64
    $region97: #{tpu_custom_call.1} parent=1 // pred_fallthru
      _
    // Predicated region
    $region98: #{tpu_custom_call.1} parent=1 // pred_check
      _
    $region99: #{tpu_custom_call.1} parent=1 // pred_check_branch
      %154 = sbr.rel (0) target = $region101
    $region100: #{tpu_custom_call.1} parent=1 // pred_region
      %155 = dma.done [#allocation15], 16
    $region101: #{tpu_custom_call.1} parent=1 // pred_fallthru
      _
    %v157 = vld [vmem:[#allocation2] sm:$0xf]
    %v158 = vld [vmem:[#allocation2 + $0x4] sm:$0xf]
    %v159 = vld [vmem:[%s3] sm:$0xf]
    %v160 = vld [vmem:[%s3 + $0x4] sm:$0xf]
    %v161 = vld [vmem:[%s3 + $0x8] sm:$0xf]
    %v162 = vld [vmem:[%s3 + $0xc] sm:$0xf]
    %v163 = vld [vmem:[%s4] sm:$0x1]
    %v165 = vlaneseq
    %v166 = vshrl.u32 %v165, 7
    %v167 = vsub.s32 0, %v166
    %v168 = vrot.slane %v163, %v167
    %v172 = vunpack.c.l.b16 %v157
    %v173 = vunpack.c.l.b16 %v158
    %v174 = vpack.c.b16 %v173, %v172
    %v179 = vunpack.c.l.b16 %v159
    %v180 = vunpack.c.l.b16 %v160
    %v181 = vunpack.c.l.b16 %v161
    %v182 = vunpack.c.l.b16 %v162
    %v183 = vpack.c.b16 %v180, %v179
    %v184 = vpack.c.b16 %v182, %v181
    %vm187 = vcmask 261120
    %v189 = vsel %vm187, %v174, 0
    %191 = vmatprep.subr.bf16.mxu0 0
    %192 = vmatpush1.bf16.msra.mxu0 %v183
    %193 = vmatprep.subr.bf16.mxu0 0
    %194 = vmatpush1.bf16.msra.mxu0 %v184
    %195 = vmatprep.subr.bf16.mxu0 0
    %196 = vmatpush1.bf16.msra.mxu0 0
    %197 = vmatprep.subr.bf16.mxu0 0
    %198 = vmatpush1.bf16.msra.mxu0 0
    %199 = vmatprep.subr.bf16.mxu0 0
    %200 = vmatpush1.bf16.msra.mxu0 0
    %201 = vmatprep.subr.bf16.mxu0 0
    %202 = vmatpush1.bf16.msra.mxu0 0
    %203 = vmatprep.subr.bf16.mxu0 0
    %204 = vmatpush1.bf16.msra.mxu0 0
    %205 = vmatprep.subr.bf16.mxu0 0
    %206 = vmatpush1.bf16.msra.mxu0 0
    %207 = vmatprep.subr.bf16.mxu0 0
    %208 = vmatpush1.bf16.msra.mxu0 0
    %209 = vmatprep.subr.bf16.mxu0 0
    %210 = vmatpush1.bf16.msra.mxu0 0
    %211 = vmatprep.subr.bf16.mxu0 0
    %212 = vmatpush1.bf16.msra.mxu0 0
    %213 = vmatprep.subr.bf16.mxu0 0
    %214 = vmatpush1.bf16.msra.mxu0 0
    %215 = vmatprep.subr.bf16.mxu0 0
    %216 = vmatpush1.bf16.msra.mxu0 0
    %217 = vmatprep.subr.bf16.mxu0 0
    %218 = vmatpush1.bf16.msra.mxu0 0
    %219 = vmatprep.subr.bf16.mxu0 0
    %220 = vmatpush1.bf16.msra.mxu0 0
    %221 = vmatprep.subr.bf16.mxu0 0
    %222 = vmatpush1.bf16.msra.mxu0 0
    %223 = vmatprep.mubr.bf16.mxu0 0
    %224 = vmatmul.mubr.bf16.gmra.mrb[0].mxu0 %v189
    %v225 = vpop.f32.mrb[0].mxu0
    %v226 = vadd.f32 %v168, %v225
    %v227 = vpop.f32.mrb[0].mxu0
    %v228 = vpop.f32.mrb[0].mxu0
    %v229 = vadd.f32 %v168, %v228
    %v230 = vpop.f32.mrb[0].mxu0
    %231 = vdwg.mxu0
    %v232 = vsub.f32 0.0, %v226
    %v233 = vsub.f32 0.0, %v229
    %v234 = vmul.f32 %v232, 1.442695
    %v235 = vpow.pop %v234
    %v236 = vmul.f32 %v233, 1.442695
    %v237 = vpow.pop %v236
    %v238 = vadd.f32 %v235, 1.0
    %v239 = vadd.f32 %v237, 1.0
    %v240 = vrcp.pop %v238
    %v241 = vrcp.pop %v239
    %v242 = vmul.f32 %v226, %v240
    %v243 = vmul.f32 %v229, %v241
    %v244 = vpack.c.bf16 %v243, %v242
    %v245 = vld [vmem:[%s5] sm:$0xf]
    %v246 = vld [vmem:[%s5 + $0x4] sm:$0xf]
    %v247 = vld [vmem:[%s5 + $0x8] sm:$0xf]
    %v248 = vld [vmem:[%s5 + $0xc] sm:$0xf]
    %v249 = vld [vmem:[%s5 + $0x10] sm:$0xf]
    %v250 = vld [vmem:[%s5 + $0x14] sm:$0xf]
    %v251 = vld [vmem:[%s5 + $0x18] sm:$0xf]
    %v252 = vld [vmem:[%s5 + $0x1c] sm:$0xf]
    %v253 = vld [vmem:[#allocation7] sm:$0x1]
    %v255 = vlaneseq
    %v256 = vshrl.u32 %v255, 7
    %v257 = vsub.s32 0, %v256
    %v258 = vrot.slane %v253, %v257
    %v268 = vunpack.c.l.b16 %v245
    %v269 = vunpack.c.l.b16 %v246
    %v270 = vunpack.c.l.b16 %v247
    %v271 = vunpack.c.l.b16 %v248
    %v272 = vunpack.c.l.b16 %v249
    %v273 = vunpack.c.l.b16 %v250
    %v274 = vunpack.c.l.b16 %v251
    %v275 = vunpack.c.l.b16 %v252
    %v276 = vpack.c.b16 %v269, %v268
    %v277 = vpack.c.b16 %v271, %v270
    %v278 = vpack.c.b16 %v273, %v272
    %v279 = vpack.c.b16 %v275, %v274
    %vm284 = vcmask 523264
    %v286 = vsel %vm284, %v244, 0
    %288 = vmatprep.subr.bf16.mxu0 0
    %289 = vmatpush1.bf16.msra.mxu0 %v276
    %290 = vmatprep.subr.bf16.mxu0 0
    %291 = vmatpush1.bf16.msra.mxu0 %v277
    %292 = vmatprep.subr.bf16.mxu0 0
    %293 = vmatpush1.bf16.msra.mxu0 %v278
    %294 = vmatprep.subr.bf16.mxu0 0
    %295 = vmatpush1.bf16.msra.mxu0 %v279
    %296 = vmatprep.subr.bf16.mxu0 0
    %297 = vmatpush1.bf16.msra.mxu0 0
    %298 = vmatprep.subr.bf16.mxu0 0
    %299 = vmatpush1.bf16.msra.mxu0 0
    %300 = vmatprep.subr.bf16.mxu0 0
    %301 = vmatpush1.bf16.msra.mxu0 0
    %302 = vmatprep.subr.bf16.mxu0 0
    %303 = vmatpush1.bf16.msra.mxu0 0
    %304 = vmatprep.subr.bf16.mxu0 0
    %305 = vmatpush1.bf16.msra.mxu0 0
    %306 = vmatprep.subr.bf16.mxu0 0
    %307 = vmatpush1.bf16.msra.mxu0 0
    %308 = vmatprep.subr.bf16.mxu0 0
    %309 = vmatpush1.bf16.msra.mxu0 0
    %310 = vmatprep.subr.bf16.mxu0 0
    %311 = vmatpush1.bf16.msra.mxu0 0
    %312 = vmatprep.subr.bf16.mxu0 0
    %313 = vmatpush1.bf16.msra.mxu0 0
    %314 = vmatprep.subr.bf16.mxu0 0
    %315 = vmatpush1.bf16.msra.mxu0 0
    %316 = vmatprep.subr.bf16.mxu0 0
    %317 = vmatpush1.bf16.msra.mxu0 0
    %318 = vmatprep.subr.bf16.mxu0 0
    %319 = vmatpush1.bf16.msra.mxu0 0
    %320 = vmatprep.mubr.bf16.mxu0 0
    %321 = vmatmul.mubr.bf16.gmra.mrb[0].mxu0 %v286
    %v322 = vpop.f32.mrb[0].mxu0
    %v323 = vadd.f32 %v258, %v322
    %v324 = vpop.f32.mrb[0].mxu0
    %v325 = vpop.f32.mrb[0].mxu0
    %v326 = vadd.f32 %v258, %v325
    %v327 = vpop.f32.mrb[0].mxu0
    %328 = vdwg.mxu0
    %v329 = vld [vmem:[#allocation5] sm:$0xf]
    %v330 = vld [vmem:[#allocation5 + $0x4] sm:$0xf]
    %v331 = vld [vmem:[#allocation8] sm:$0xf]
    %v332 = vld [vmem:[#allocation8 + $0x4] sm:$0xf]
    %v333 = vpack.c.bf16 %v326, %v323
    %v334 = vld [vmem:[%s8] sm:$0xf]
    %v335 = vld [vmem:[%s8 + $0x4] sm:$0xf]
    %v336 = vld [vmem:[%s8 + $0x8] sm:$0xf]
    %v337 = vld [vmem:[%s8 + $0xc] sm:$0xf]
    %v338 = vld [vmem:[%s8 + $0x10] sm:$0xf]
    %v339 = vld [vmem:[%s8 + $0x14] sm:$0xf]
    %v340 = vld [vmem:[%s8 + $0x18] sm:$0xf]
    %v341 = vld [vmem:[%s8 + $0x1c] sm:$0xf]
    %v350 = vunpack.c.l.b16 %v334
    %v351 = vunpack.c.l.b16 %v335
    %v352 = vunpack.c.l.b16 %v336
    %v353 = vunpack.c.l.b16 %v337
    %v354 = vunpack.c.l.b16 %v338
    %v355 = vunpack.c.l.b16 %v339
    %v356 = vunpack.c.l.b16 %v340
    %v357 = vunpack.c.l.b16 %v341
    %v358 = vpack.c.b16 %v351, %v350
    %v359 = vpack.c.b16 %v353, %v352
    %v360 = vpack.c.b16 %v355, %v354
    %v361 = vpack.c.b16 %v357, %v356
    %v367 = vsel %vm284, %v333, 0
    %369 = vmatprep.subr.bf16.mxu0 0
    %370 = vmatpush1.bf16.msra.mxu0 %v358
    %371 = vmatprep.subr.bf16.mxu0 0
    %372 = vmatpush1.bf16.msra.mxu0 %v359
    %373 = vmatprep.subr.bf16.mxu0 0
    %374 = vmatpush1.bf16.msra.mxu0 %v360
    %375 = vmatprep.subr.bf16.mxu0 0
    %376 = vmatpush1.bf16.msra.mxu0 %v361
    %377 = vmatprep.subr.bf16.mxu0 0
    %378 = vmatpush1.bf16.msra.mxu0 0
    %379 = vmatprep.subr.bf16.mxu0 0
    %380 = vmatpush1.bf16.msra.mxu0 0
    %381 = vmatprep.subr.bf16.mxu0 0
    %382 = vmatpush1.bf16.msra.mxu0 0
    %383 = vmatprep.subr.bf16.mxu0 0
    %384 = vmatpush1.bf16.msra.mxu0 0
    %385 = vmatprep.subr.bf16.mxu0 0
    %386 = vmatpush1.bf16.msra.mxu0 0
    %387 = vmatprep.subr.bf16.mxu0 0
    %388 = vmatpush1.bf16.msra.mxu0 0
    %389 = vmatprep.subr.bf16.mxu0 0
    %390 = vmatpush1.bf16.msra.mxu0 0
    %391 = vmatprep.subr.bf16.mxu0 0
    %392 = vmatpush1.bf16.msra.mxu0 0
    %393 = vmatprep.subr.bf16.mxu0 0
    %394 = vmatpush1.bf16.msra.mxu0 0
    %395 = vmatprep.subr.bf16.mxu0 0
    %396 = vmatpush1.bf16.msra.mxu0 0
    %397 = vmatprep.subr.bf16.mxu0 0
    %398 = vmatpush1.bf16.msra.mxu0 0
    %399 = vmatprep.subr.bf16.mxu0 0
    %400 = vmatpush1.bf16.msra.mxu0 0
    %401 = vmatprep.mubr.bf16.mxu0 0
    %402 = vmatmul.mubr.bf16.gmra.mrb[0].mxu0 %v367
    %v403 = vpop.f32.mrb[0].mxu0
    %v404 = vadd.f32 0.0, %v403
    %v405 = vpop.f32.mrb[0].mxu0
    %v406 = vpop.f32.mrb[0].mxu0
    %v407 = vadd.f32 0.0, %v406
    %v408 = vpop.f32.mrb[0].mxu0
    %409 = vdwg.mxu0
    %v412 = vunpack.c.l.b16 %v329
    %v413 = vunpack.c.l.b16 %v330
    %v414 = vpack.c.b16 %v413, %v412
    %v417 = vunpack.c.l.b16 %v331
    %v418 = vunpack.c.l.b16 %v332
    %v419 = vpack.c.b16 %v418, %v417
    %vm421 = vcmask 130048
    %v423 = vsel %vm421, %v414, 0
    %425 = vmatprep.subr.bf16.mxu0 0
    %426 = vmatpush1.bf16.msra.mxu0 %v419
    %427 = vmatprep.subr.bf16.mxu0 0
    %428 = vmatpush1.bf16.msra.mxu0 0
    %429 = vmatprep.subr.bf16.mxu0 0
    %430 = vmatpush1.bf16.msra.mxu0 0
    %431 = vmatprep.subr.bf16.mxu0 0
    %432 = vmatpush1.bf16.msra.mxu0 0
    %433 = vmatprep.subr.bf16.mxu0 0
    %434 = vmatpush1.bf16.msra.mxu0 0
    %435 = vmatprep.subr.bf16.mxu0 0
    %436 = vmatpush1.bf16.msra.mxu0 0
    %437 = vmatprep.subr.bf16.mxu0 0
    %438 = vmatpush1.bf16.msra.mxu0 0
    %439 = vmatprep.subr.bf16.mxu0 0
    %440 = vmatpush1.bf16.msra.mxu0 0
    %441 = vmatprep.subr.bf16.mxu0 0
    %442 = vmatpush1.bf16.msra.mxu0 0
    %443 = vmatprep.subr.bf16.mxu0 0
    %444 = vmatpush1.bf16.msra.mxu0 0
    %445 = vmatprep.subr.bf16.mxu0 0
    %446 = vmatpush1.bf16.msra.mxu0 0
    %447 = vmatprep.subr.bf16.mxu0 0
    %448 = vmatpush1.bf16.msra.mxu0 0
    %449 = vmatprep.subr.bf16.mxu0 0
    %450 = vmatpush1.bf16.msra.mxu0 0
    %451 = vmatprep.subr.bf16.mxu0 0
    %452 = vmatpush1.bf16.msra.mxu0 0
    %453 = vmatprep.subr.bf16.mxu0 0
    %454 = vmatpush1.bf16.msra.mxu0 0
    %455 = vmatprep.subr.bf16.mxu0 0
    %456 = vmatpush1.bf16.msra.mxu0 0
    %457 = vmatprep.mubr.bf16.mxu0 0
    %458 = vmatmul.mubr.bf16.gmra.mrb[0].mxu0 %v423
    %v459 = vpop.f32.mrb[0].mxu0
    %v460 = vadd.f32 %v404, %v459
    %v461 = vpop.f32.mrb[0].mxu0
    %v462 = vpop.f32.mrb[0].mxu0
    %v463 = vadd.f32 %v407, %v462
    %v464 = vpop.f32.mrb[0].mxu0
    %465 = vdwg.mxu0
    %v466 = vld [vmem:[#allocation10] sm:$0x1]
    %v468 = vlaneseq
    %v469 = vshrl.u32 %v468, 7
    %v470 = vsub.s32 0, %v469
    %v471 = vrot.slane %v466, %v470
    %v473 = vadd.f32 %v460, %v471
    %v474 = vadd.f32 %v463, %v471
    %vm475 = vcmp.ge.f32.partialorder %v473, 0.0
    %vm476 = vcmp.ge.f32.partialorder %v474, 0.0
    %v477 = vmul.f32 %v473, 0.2
    %v478 = vmul.f32 %v474, 0.2
    %v479 = vsel %vm475, %v473, %v477
    %v480 = vsel %vm476, %v474, %v478
    %v481 = vpack.c.bf16 %v480, %v479
    %v482 = vld [vmem:[%s10] sm:$0xf]
    %v483 = vld [vmem:[%s10 + $0x4] sm:$0xf]
    %v484 = vld [vmem:[%s10 + $0x8] sm:$0xf]
    %v485 = vld [vmem:[%s10 + $0xc] sm:$0xf]
    %v486 = vld [vmem:[#allocation11] sm:$0x1]
    %v488 = vlaneseq
    %v489 = vshrl.u32 %v488, 7
    %v490 = vsub.s32 0, %v489
    %v491 = vrot.slane %v486, %v490
    %v497 = vunpack.c.l.b16 %v482
    %v498 = vunpack.c.l.b16 %v483
    %v499 = vunpack.c.l.b16 %v484
    %v500 = vunpack.c.l.b16 %v485
    %v501 = vpack.c.b16 %v498, %v497
    %v502 = vpack.c.b16 %v500, %v499
    %v506 = vsel %vm187, %v481, 0
    %508 = vmatprep.subr.bf16.mxu0 0
    %509 = vmatpush1.bf16.msra.mxu0 %v501
    %510 = vmatprep.subr.bf16.mxu0 0
    %511 = vmatpush1.bf16.msra.mxu0 %v502
    %512 = vmatprep.subr.bf16.mxu0 0
    %513 = vmatpush1.bf16.msra.mxu0 0
    %514 = vmatprep.subr.bf16.mxu0 0
    %515 = vmatpush1.bf16.msra.mxu0 0
    %516 = vmatprep.subr.bf16.mxu0 0
    %517 = vmatpush1.bf16.msra.mxu0 0
    %518 = vmatprep.subr.bf16.mxu0 0
    %519 = vmatpush1.bf16.msra.mxu0 0
    %520 = vmatprep.subr.bf16.mxu0 0
    %521 = vmatpush1.bf16.msra.mxu0 0
    %522 = vmatprep.subr.bf16.mxu0 0
    %523 = vmatpush1.bf16.msra.mxu0 0
    %524 = vmatprep.subr.bf16.mxu0 0
    %525 = vmatpush1.bf16.msra.mxu0 0
    %526 = vmatprep.subr.bf16.mxu0 0
    %527 = vmatpush1.bf16.msra.mxu0 0
    %528 = vmatprep.subr.bf16.mxu0 0
    %529 = vmatpush1.bf16.msra.mxu0 0
    %530 = vmatprep.subr.bf16.mxu0 0
    %531 = vmatpush1.bf16.msra.mxu0 0
    %532 = vmatprep.subr.bf16.mxu0 0
    %533 = vmatpush1.bf16.msra.mxu0 0
    %534 = vmatprep.subr.bf16.mxu0 0
    %535 = vmatpush1.bf16.msra.mxu0 0
    %536 = vmatprep.subr.bf16.mxu0 0
    %537 = vmatpush1.bf16.msra.mxu0 0
    %538 = vmatprep.subr.bf16.mxu0 0
    %539 = vmatpush1.bf16.msra.mxu0 0
    %540 = vmatprep.mubr.bf16.mxu0 0
    %541 = vmatmul.mubr.bf16.gmra.mrb[0].mxu0 %v506
    %v542 = vpop.f32.mrb[0].mxu0
    %v543 = vadd.f32 %v491, %v542
    %v544 = vpop.f32.mrb[0].mxu0
    %v545 = vpop.f32.mrb[0].mxu0
    %v546 = vadd.f32 %v491, %v545
    %v547 = vpop.f32.mrb[0].mxu0
    %548 = vdwg.mxu0
    %vm549 = vcmp.ge.f32.partialorder %v543, 0.0
    %vm550 = vcmp.ge.f32.partialorder %v546, 0.0
    %v551 = vmul.f32 %v543, 0.2
    %v552 = vmul.f32 %v546, 0.2
    %v553 = vsel %vm549, %v543, %v551
    %v554 = vsel %vm550, %v546, %v552
    %v555 = vpack.c.bf16 %v554, %v553
    %v556 = vld [vmem:[%s12] sm:$0xf]
    %v557 = vld [vmem:[%s12 + $0x4] sm:$0xf]
    %v558 = vld [vmem:[%s12 + $0x8] sm:$0xf]
    %v559 = vld [vmem:[%s12 + $0xc] sm:$0xf]
    %v560 = vld [vmem:[%s2] sm:$0xf]
    %v561 = vld [vmem:[%s2 + $0x4] sm:$0xf]
    %v562 = vld [vmem:[#allocation13] sm:$0xf]
    %v565 = vunpack.c.l.b16 %v560
    %v566 = vunpack.c.l.b16 %v561
    %v567 = vpack.c.b16 %v566, %v565
    %vm568 = vcmask 64512
    %v570 = vsel %vm568, %v567, 0
    %vm572 = vcmask 1043456
    %v574 = vsel %vm572, %v562, 0
    %576 = vmatprep.subr.bf16.mxu0 0
    %577 = vmatpush1.bf16.msra.mxu0 %v574
    %578 = vmatprep.subr.bf16.mxu0 0
    %579 = vmatpush1.bf16.msra.mxu0 0
    %580 = vmatprep.subr.bf16.mxu0 0
    %581 = vmatpush1.bf16.msra.mxu0 0
    %582 = vmatprep.subr.bf16.mxu0 0
    %583 = vmatpush1.bf16.msra.mxu0 0
    %584 = vmatprep.subr.bf16.mxu0 0
    %585 = vmatpush1.bf16.msra.mxu0 0
    %586 = vmatprep.subr.bf16.mxu0 0
    %587 = vmatpush1.bf16.msra.mxu0 0
    %588 = vmatprep.subr.bf16.mxu0 0
    %589 = vmatpush1.bf16.msra.mxu0 0
    %590 = vmatprep.subr.bf16.mxu0 0
    %591 = vmatpush1.bf16.msra.mxu0 0
    %592 = vmatprep.subr.bf16.mxu0 0
    %593 = vmatpush1.bf16.msra.mxu0 0
    %594 = vmatprep.subr.bf16.mxu0 0
    %595 = vmatpush1.bf16.msra.mxu0 0
    %596 = vmatprep.subr.bf16.mxu0 0
    %597 = vmatpush1.bf16.msra.mxu0 0
    %598 = vmatprep.subr.bf16.mxu0 0
    %599 = vmatpush1.bf16.msra.mxu0 0
    %600 = vmatprep.subr.bf16.mxu0 0
    %601 = vmatpush1.bf16.msra.mxu0 0
    %602 = vmatprep.subr.bf16.mxu0 0
    %603 = vmatpush1.bf16.msra.mxu0 0
    %604 = vmatprep.subr.bf16.mxu0 0
    %605 = vmatpush1.bf16.msra.mxu0 0
    %606 = vmatprep.subr.bf16.mxu0 0
    %607 = vmatpush1.bf16.msra.mxu0 0
    %608 = vmatprep.mubr.bf16.mxu0 0
    %609 = vmatmul.mubr.bf16.gmra.mrb[0].mxu0 %v570
    %v610 = vpop.f32.mrb[0].mxu0
    %v611 = vadd.f32 0.0, %v610
    %v612 = vpop.f32.mrb[0].mxu0
    %v613 = vpop.f32.mrb[0].mxu0
    %v614 = vadd.f32 0.0, %v613
    %v615 = vpop.f32.mrb[0].mxu0
    %616 = vdwg.mxu0
    %v621 = vunpack.c.l.b16 %v556
    %v622 = vunpack.c.l.b16 %v557
    %v623 = vunpack.c.l.b16 %v558
    %v624 = vunpack.c.l.b16 %v559
    %v625 = vpack.c.b16 %v622, %v621
    %v626 = vpack.c.b16 %v624, %v623
    %v630 = vsel %vm187, %v555, 0
    %632 = vmatprep.subr.bf16.mxu0 0
    %633 = vmatpush1.bf16.msra.mxu0 %v625
    %634 = vmatprep.subr.bf16.mxu0 0
    %635 = vmatpush1.bf16.msra.mxu0 %v626
    %636 = vmatprep.subr.bf16.mxu0 0
    %637 = vmatpush1.bf16.msra.mxu0 0
    %638 = vmatprep.subr.bf16.mxu0 0
    %639 = vmatpush1.bf16.msra.mxu0 0
    %640 = vmatprep.subr.bf16.mxu0 0
    %641 = vmatpush1.bf16.msra.mxu0 0
    %642 = vmatprep.subr.bf16.mxu0 0
    %643 = vmatpush1.bf16.msra.mxu0 0
    %644 = vmatprep.subr.bf16.mxu0 0
    %645 = vmatpush1.bf16.msra.mxu0 0
    %646 = vmatprep.subr.bf16.mxu0 0
    %647 = vmatpush1.bf16.msra.mxu0 0
    %648 = vmatprep.subr.bf16.mxu0 0
    %649 = vmatpush1.bf16.msra.mxu0 0
    %650 = vmatprep.subr.bf16.mxu0 0
    %651 = vmatpush1.bf16.msra.mxu0 0
    %652 = vmatprep.subr.bf16.mxu0 0
    %653 = vmatpush1.bf16.msra.mxu0 0
    %654 = vmatprep.subr.bf16.mxu0 0
    %655 = vmatpush1.bf16.msra.mxu0 0
    %656 = vmatprep.subr.bf16.mxu0 0
    %657 = vmatpush1.bf16.msra.mxu0 0
    %658 = vmatprep.subr.bf16.mxu0 0
    %659 = vmatpush1.bf16.msra.mxu0 0
    %660 = vmatprep.subr.bf16.mxu0 0
    %661 = vmatpush1.bf16.msra.mxu0 0
    %662 = vmatprep.subr.bf16.mxu0 0
    %663 = vmatpush1.bf16.msra.mxu0 0
    %664 = vmatprep.mubr.bf16.mxu0 0
    %665 = vmatmul.mubr.bf16.gmra.mrb[0].mxu0 %v630
    %v666 = vpop.f32.mrb[0].mxu0
    %v667 = vadd.f32 %v611, %v666
    %v668 = vpop.f32.mrb[0].mxu0
    %v669 = vpop.f32.mrb[0].mxu0
    %v670 = vadd.f32 %v614, %v669
    %v671 = vpop.f32.mrb[0].mxu0
    %672 = vdwg.mxu0
    %v673 = vld [vmem:[#allocation14] sm:$0x1]
    %v675 = vlaneseq
    %v676 = vshrl.u32 %v675, 7
    %v677 = vsub.s32 0, %v676
    %v678 = vrot.slane %v673, %v677
    %v680 = vadd.f32 %v667, %v678
    %v681 = vadd.f32 %v670, %v678
    %vm682 = vcmp.ge.f32.partialorder %v680, 0.0
    %vm683 = vcmp.ge.f32.partialorder %v681, 0.0
    %v684 = vmul.f32 %v680, 0.2
    %v685 = vmul.f32 %v681, 0.2
    %v686 = vsel %vm682, %v680, %v684
    %v687 = vsel %vm683, %v681, %v685
    %v688 = vpack.c.bf16 %v687, %v686
    %v689 = vld [vmem:[%s15] sm:$0xf]
    %v690 = vld [vmem:[%s15 + $0x4] sm:$0xf]
    %v691 = vld [vmem:[%s15 + $0x8] sm:$0xf]
    %v692 = vld [vmem:[%s15 + $0xc] sm:$0xf]
    %v693 = vld [vmem:[%s16] sm:$0x1]
    %v695 = vlaneseq
    %v696 = vshrl.u32 %v695, 7
    %v697 = vsub.s32 0, %v696
    %v698 = vrot.slane %v693, %v697
    %v704 = vunpack.c.l.b16 %v689
    %v705 = vunpack.c.l.b16 %v690
    %v706 = vunpack.c.l.b16 %v691
    %v707 = vunpack.c.l.b16 %v692
    %v708 = vpack.c.b16 %v705, %v704
    %v709 = vpack.c.b16 %v707, %v706
    %v713 = vsel %vm187, %v688, 0
    %715 = vmatprep.subr.bf16.mxu0 0
    %716 = vmatpush1.bf16.msra.mxu0 %v708
    %717 = vmatprep.subr.bf16.mxu0 0
    %718 = vmatpush1.bf16.msra.mxu0 %v709
    %719 = vmatprep.subr.bf16.mxu0 0
    %720 = vmatpush1.bf16.msra.mxu0 0
    %721 = vmatprep.subr.bf16.mxu0 0
    %722 = vmatpush1.bf16.msra.mxu0 0
    %723 = vmatprep.subr.bf16.mxu0 0
    %724 = vmatpush1.bf16.msra.mxu0 0
    %725 = vmatprep.subr.bf16.mxu0 0
    %726 = vmatpush1.bf16.msra.mxu0 0
    %727 = vmatprep.subr.bf16.mxu0 0
    %728 = vmatpush1.bf16.msra.mxu0 0
    %729 = vmatprep.subr.bf16.mxu0 0
    %730 = vmatpush1.bf16.msra.mxu0 0
    %731 = vmatprep.subr.bf16.mxu0 0
    %732 = vmatpush1.bf16.msra.mxu0 0
    %733 = vmatprep.subr.bf16.mxu0 0
    %734 = vmatpush1.bf16.msra.mxu0 0
    %735 = vmatprep.subr.bf16.mxu0 0
    %736 = vmatpush1.bf16.msra.mxu0 0
    %737 = vmatprep.subr.bf16.mxu0 0
    %738 = vmatpush1.bf16.msra.mxu0 0
    %739 = vmatprep.subr.bf16.mxu0 0
    %740 = vmatpush1.bf16.msra.mxu0 0
    %741 = vmatprep.subr.bf16.mxu0 0
    %742 = vmatpush1.bf16.msra.mxu0 0
    %743 = vmatprep.subr.bf16.mxu0 0
    %744 = vmatpush1.bf16.msra.mxu0 0
    %745 = vmatprep.subr.bf16.mxu0 0
    %746 = vmatpush1.bf16.msra.mxu0 0
    %747 = vmatprep.mubr.bf16.mxu0 0
    %748 = vmatmul.mubr.bf16.gmra.mrb[0].mxu0 %v713
    %v749 = vpop.f32.mrb[0].mxu0
    %v750 = vadd.f32 %v698, %v749
    %v751 = vpop.f32.mrb[0].mxu0
    %v752 = vpop.f32.mrb[0].mxu0
    %v753 = vadd.f32 %v698, %v752
    %v754 = vpop.f32.mrb[0].mxu0
    %755 = vdwg.mxu0
    %v756 = vmax.f32 %v750, 0.0
    %v757 = vmax.f32 %v753, 0.0
    %758 = vst [vmem:[#allocation16] sm:$0xff] %v756
    %759 = vst [vmem:[#allocation16 + $0x8] sm:$0xff] %v757
    // Predicated region
    $region102: #{tpu_custom_call.1} parent=1 // pred_check
      _
    $region103: #{tpu_custom_call.1} parent=1 // pred_check_branch
      %761 = sbr.rel (0) target = $region105
    $region104: #{tpu_custom_call.1} parent=1 // pred_region
      %s763 = ssub.s32 256, 256
      %764 = vsyncadd [#allocation4], %s763
      %s765 = sshll.u32 [#allocation16], 4
      %s766 = int_to_ptr.vmem [resolvable:$true] %s765
      %771 = dma.vmem_to_hbm [thread:$0]  %s766, 256, %s17, [#allocation4], 128, 128, 8
    $region105: #{tpu_custom_call.1} parent=1 // pred_fallthru
      _
    // Predicated region
    $region106: #{tpu_custom_call.1} parent=1 // pred_check
      _
    $region107: #{tpu_custom_call.1} parent=1 // pred_check_branch
      %773 = sbr.rel (0) target = $region109
    $region108: #{tpu_custom_call.1} parent=1 // pred_region
      %774 = dma.done [#allocation4], 256
    $region109: #{tpu_custom_call.1} parent=1 // pred_fallthru
      _
    %775 = vsyncpa [#allocation3], 1
    %776 = vsyncpa [#allocation6], 1
    %777 = vsyncpa [#allocation9], 1
    %778 = vsyncpa [#allocation12], 1
    %779 = vsyncpa [#allocation15], 1
    %780 = vsyncpa [#allocation4], 1

// kernel: tpu_custom_call.1
$region0: #{tpu_custom_call.1}
  #allocation0 [shape = 'u32[]', space=smem, size = 0x4, offset = 0x4, fixed_abs, tag = 'smem constant byte address 0x4 - core index']
  #allocation1 [shape = 'u32[144,128]{1,0:T(1,128)}', space=vmem, size = 0x12000, scoped, tag = 'internal scratch']
  %s0 = inlined_call_operand.hbm [shape: bf16[16,32], index: 0, kind: input, shape index: {}]
  %s1 = inlined_call_operand.hbm [shape: bf16[16,16], index: 1, kind: input, shape index: {}]
  %s2 = inlined_call_operand.vmem [shape: bf16[16,8], index: 2, kind: input, shape index: {}]
  %s3 = inlined_call_operand.vmem [shape: bf16[32,64], index: 3, kind: input, shape index: {}]
  %s4 = inlined_call_operand.vmem [shape: f32[1,64], index: 4, kind: input, shape index: {}]
  %s5 = inlined_call_operand.vmem [shape: bf16[64,64], index: 5, kind: input, shape index: {}]
  %s6 = inlined_call_operand.hbm [shape: f32[1,64], index: 6, kind: input, shape index: {}]
  %s7 = inlined_call_operand.hbm [shape: bf16[16,32], index: 7, kind: input, shape index: {}]
  %s8 = inlined_call_operand.vmem [shape: bf16[64,32], index: 8, kind: input, shape index: {}]
  %s9 = inlined_call_operand.hbm [shape: f32[1,32], index: 9, kind: input, shape index: {}]
  %s10 = inlined_call_operand.vmem [shape: bf16[32,32], index: 10, kind: input, shape index: {}]
  %s11 = inlined_call_operand.hbm [shape: f32[1,32], index: 11, kind: input, shape index: {}]
  %s12 = inlined_call_operand.vmem [shape: bf16[32,32], index: 12, kind: input, shape index: {}]
  %s13 = inlined_call_operand.hbm [shape: bf16[8,32], index: 13, kind: input, shape index: {}]
  %s14 = inlined_call_operand.hbm [shape: f32[1,32], index: 14, kind: input, shape index: {}]
  %s15 = inlined_call_operand.vmem [shape: bf16[32,128], index: 15, kind: input, shape index: {}]
  %s16 = inlined_call_operand.vmem [shape: f32[1,128], index: 16, kind: input, shape index: {}]
  %s17 = inlined_call_operand.hbm [shape: f32[16,128], index: 17, kind: output, shape index: {}]
  %s18 = sld [smem:[#allocation0]]
  $region110: #{tpu_custom_call.1} parent=0
    _
  %s20 = ssub.s32 1, %s18
  %s21 = scalar_select 0, %s20, %s18
  $region1: #{tpu_custom_call.1} parent=0
    #allocation2 [shape = 'u8[4096]{0}', space=vmem, size = 0x1000, scoped, tag = 'input window, operand 0, single buffered']
    #allocation3 [shape = 's32[1]{0}', space=sflag, size = 0x4, scoped, tag = 'scoped memory for tpu_custom_call.1']
    #allocation4 [shape = 's32[1]{0}', space=sflag, size = 0x4, scoped, tag = 'scoped memory for tpu_custom_call.1']
    #allocation5 [shape = 'u8[4096]{0}', space=vmem, size = 0x1000, scoped, tag = 'input window, operand 1, single buffered']
    #allocation6 [shape = 's32[1]{0}', space=sflag, size = 0x4, scoped, tag = 'scoped memory for tpu_custom_call.1']
    #allocation7 [shape = 'u8[512]{0}', space=vmem, size = 0x400, scoped, tag = 'input window, operand 6, single buffered']
    #allocation8 [shape = 'u8[4096]{0}', space=vmem, size = 0x1000, scoped, tag = 'input window, operand 7, single buffered']
    #allocation9 [shape = 's32[1]{0}', space=sflag, size = 0x4, scoped, tag = 'scoped memory for tpu_custom_call.1']
    #allocation10 [shape = 'u8[512]{0}', space=vmem, size = 0x400, scoped, tag = 'input window, operand 9, single buffered']
    #allocation11 [shape = 'u8[512]{0}', space=vmem, size = 0x400, scoped, tag = 'input window, operand 11, single buffered']
    #allocation12 [shape = 's32[1]{0}', space=sflag, size = 0x4, scoped, tag = 'scoped memory for tpu_custom_call.1']
    #allocation13 [shape = 'u8[2048]{0}', space=vmem, size = 0x800, scoped, tag = 'input window, operand 13, single buffered']
    #allocation14 [shape = 'u8[512]{0}', space=vmem, size = 0x400, scoped, tag = 'input window, operand 14, single buffered']
    #allocation15 [shape = 's32[1]{0}', space=sflag, size = 0x4, scoped, tag = 'scoped memory for tpu_custom_call.1']
    #allocation16 [shape = 'u8[8192]{0}', space=vmem, size = 0x2000, scoped, tag = 'output window, operand 0, single buffered']
    %22 = vsyncpa [#allocation3], 0
    %23 = vsyncpa [#allocation6], 0
    %24 = vsyncpa [#allocation9], 0
    %25 = vsyncpa [#allocation12], 0
    %26 = vsyncpa [#allocation15], 0
    %27 = vsyncpa [#allocation4], 0
    // Predicated region
    $region2: #{tpu_custom_call.1} parent=1 // pred_check
      _
    $region3: #{tpu_custom_call.1} parent=1 // pred_check_branch
      %29 = sbr.rel (0) target = $region5
    $region4: #{tpu_custom_call.1} parent=1 // pred_region
      %s31 = ssub.s32 128, 128
      %32 = vsyncadd [#allocation3], %s31
      %s33 = sshll.u32 [#allocation2], 4
      %s34 = int_to_ptr.vmem [resolvable:$true] %s33
      %39 = dma.hbm_to_vmem [thread:$0]  %s0, 128, %s34, [#allocation3], 64, 64, 4
    $region5: #{tpu_custom_call.1} parent=1 // pred_fallthru
      _
    // Predicated region
    $region6: #{tpu_custom_call.1} parent=1 // pred_check
      _
    $region7: #{tpu_custom_call.1} parent=1 // pred_check_branch
      %41 = sbr.rel (0) target = $region9
    $region8: #{tpu_custom_call.1} parent=1 // pred_region
      %s43 = ssub.s32 128, 128
      %44 = vsyncadd [#allocation6], %s43
      %s45 = sshll.u32 [#allocation5], 4
      %s46 = int_to_ptr.vmem [resolvable:$true] %s45
      %51 = dma.hbm_to_vmem [thread:$0]  %s1, 128, %s46, [#allocation6], 64, 64, 4
    $region9: #{tpu_custom_call.1} parent=1 // pred_fallthru
      _
    // Predicated region
    $region10: #{tpu_custom_call.1} parent=1 // pred_check
      _
    $region11: #{tpu_custom_call.1} parent=1 // pred_check_branch
      %53 = sbr.rel (0) target = $region13
    $region12: #{tpu_custom_call.1} parent=1 // pred_region
      _
    $region13: #{tpu_custom_call.1} parent=1 // pred_fallthru
      _
    // Predicated region
    $region14: #{tpu_custom_call.1} parent=1 // pred_check
      _
    $region15: #{tpu_custom_call.1} parent=1 // pred_check_branch
      %55 = sbr.rel (0) target = $region17
    $region16: #{tpu_custom_call.1} parent=1 // pred_region
      _
    $region17: #{tpu_custom_call.1} parent=1 // pred_fallthru
      _
    // Predicated region
    $region18: #{tpu_custom_call.1} parent=1 // pred_check
      _
    $region19: #{tpu_custom_call.1} parent=1 // pred_check_branch
      %57 = sbr.rel (0) target = $region21
    $region20: #{tpu_custom_call.1} parent=1 // pred_region
      _
    $region21: #{tpu_custom_call.1} parent=1 // pred_fallthru
      _
    // Predicated region
    $region22: #{tpu_custom_call.1} parent=1 // pred_check
      _
    $region23: #{tpu_custom_call.1} parent=1 // pred_check_branch
      %59 = sbr.rel (0) target = $region25
    $region24: #{tpu_custom_call.1} parent=1 // pred_region
      _
    $region25: #{tpu_custom_call.1} parent=1 // pred_fallthru
      _
    // Predicated region
    $region26: #{tpu_custom_call.1} parent=1 // pred_check
      _
    $region27: #{tpu_custom_call.1} parent=1 // pred_check_branch
      %61 = sbr.rel (0) target = $region29
    $region28: #{tpu_custom_call.1} parent=1 // pred_region
      %s63 = ssub.s32 16, 16
      %64 = vsyncadd [#allocation6], %s63
      %s66 = sshll.u32 [#allocation7], 4
      %s67 = int_to_ptr.vmem [resolvable:$true] %s66
      %69 = dma.hbm_to_vmem [thread:$0]  %s6, 16, %s67, [#allocation6]
    $region29: #{tpu_custom_call.1} parent=1 // pred_fallthru
      _
    // Predicated region
    $region30: #{tpu_custom_call.1} parent=1 // pred_check
      _
    $region31: #{tpu_custom_call.1} parent=1 // pred_check_branch
      %71 = sbr.rel (0) target = $region33
    $region32: #{tpu_custom_call.1} parent=1 // pred_region
      %s73 = ssub.s32 128, 128
      %74 = vsyncadd [#allocation9], %s73
      %s75 = sshll.u32 [#allocation8], 4
      %s76 = int_to_ptr.vmem [resolvable:$true] %s75
      %81 = dma.hbm_to_vmem [thread:$0]  %s7, 128, %s76, [#allocation9], 64, 64, 4
    $region33: #{tpu_custom_call.1} parent=1 // pred_fallthru
      _
    // Predicated region
    $region34: #{tpu_custom_call.1} parent=1 // pred_check
      _
    $region35: #{tpu_custom_call.1} parent=1 // pred_check_branch
      %83 = sbr.rel (0) target = $region37
    $region36: #{tpu_custom_call.1} parent=1 // pred_region
      _
    $region37: #{tpu_custom_call.1} parent=1 // pred_fallthru
      _
    // Predicated region
    $region38: #{tpu_custom_call.1} parent=1 // pred_check
      _
    $region39: #{tpu_custom_call.1} parent=1 // pred_check_branch
      %85 = sbr.rel (0) target = $region41
    $region40: #{tpu_custom_call.1} parent=1 // pred_region
      %s87 = ssub.s32 16, 16
      %88 = vsyncadd [#allocation9], %s87
      %s90 = sshll.u32 [#allocation10], 4
      %s91 = int_to_ptr.vmem [resolvable:$true] %s90
      %93 = dma.hbm_to_vmem [thread:$0]  %s9, 16, %s91, [#allocation9]
    $region41: #{tpu_custom_call.1} parent=1 // pred_fallthru
      _
    // Predicated region
    $region42: #{tpu_custom_call.1} parent=1 // pred_check
      _
    $region43: #{tpu_custom_call.1} parent=1 // pred_check_branch
      %95 = sbr.rel (0) target = $region45
    $region44: #{tpu_custom_call.1} parent=1 // pred_region
      _
    $region45: #{tpu_custom_call.1} parent=1 // pred_fallthru
      _
    // Predicated region
    $region46: #{tpu_custom_call.1} parent=1 // pred_check
      _
    $region47: #{tpu_custom_call.1} parent=1 // pred_check_branch
      %97 = sbr.rel (0) target = $region49
    $region48: #{tpu_custom_call.1} parent=1 // pred_region
      %s99 = ssub.s32 16, 16
      %100 = vsyncadd [#allocation12], %s99
      %s102 = sshll.u32 [#allocation11], 4
      %s103 = int_to_ptr.vmem [resolvable:$true] %s102
      %105 = dma.hbm_to_vmem [thread:$0]  %s11, 16, %s103, [#allocation12]
    $region49: #{tpu_custom_call.1} parent=1 // pred_fallthru
      _
    // Predicated region
    $region50: #{tpu_custom_call.1} parent=1 // pred_check
      _
    $region51: #{tpu_custom_call.1} parent=1 // pred_check_branch
      %107 = sbr.rel (0) target = $region53
    $region52: #{tpu_custom_call.1} parent=1 // pred_region
      _
    $region53: #{tpu_custom_call.1} parent=1 // pred_fallthru
      _
    // Predicated region
    $region54: #{tpu_custom_call.1} parent=1 // pred_check
      _
    $region55: #{tpu_custom_call.1} parent=1 // pred_check_branch
      %109 = sbr.rel (0) target = $region57
    $region56: #{tpu_custom_call.1} parent=1 // pred_region
      %s111 = ssub.s32 64, 64
      %112 = vsyncadd [#allocation12], %s111
      %s114 = sshll.u32 [#allocation13], 4
      %s115 = int_to_ptr.vmem [resolvable:$true] %s114
      %117 = dma.hbm_to_vmem [thread:$0]  %s13, 64, %s115, [#allocation12]
    $region57: #{tpu_custom_call.1} parent=1 // pred_fallthru
      _
    // Predicated region
    $region58: #{tpu_custom_call.1} parent=1 // pred_check
      _
    $region59: #{tpu_custom_call.1} parent=1 // pred_check_branch
      %119 = sbr.rel (0) target = $region61
    $region60: #{tpu_custom_call.1} parent=1 // pred_region
      %s121 = ssub.s32 16, 16
      %122 = vsyncadd [#allocation15], %s121
      %s124 = sshll.u32 [#allocation14], 4
      %s125 = int_to_ptr.vmem [resolvable:$true] %s124
      %127 = dma.hbm_to_vmem [thread:$0]  %s14, 16, %s125, [#allocation15]
    $region61: #{tpu_custom_call.1} parent=1 // pred_fallthru
      _
    // Predicated region
    $region62: #{tpu_custom_call.1} parent=1 // pred_check
      _
    $region63: #{tpu_custom_call.1} parent=1 // pred_check_branch
      %129 = sbr.rel (0) target = $region65
    $region64: #{tpu_custom_call.1} parent=1 // pred_region
      _
    $region65: #{tpu_custom_call.1} parent=1 // pred_fallthru
      _
    // Predicated region
    $region66: #{tpu_custom_call.1} parent=1 // pred_check
      _
    $region67: #{tpu_custom_call.1} parent=1 // pred_check_branch
      %131 = sbr.rel (0) target = $region69
    $region68: #{tpu_custom_call.1} parent=1 // pred_region
      _
    $region69: #{tpu_custom_call.1} parent=1 // pred_fallthru
      _
    // Predicated region
    $region70: #{tpu_custom_call.1} parent=1 // pred_check
      _
    $region71: #{tpu_custom_call.1} parent=1 // pred_check_branch
      %133 = sbr.rel (0) target = $region73
    $region72: #{tpu_custom_call.1} parent=1 // pred_region
      %134 = dma.done [#allocation3], 128
    $region73: #{tpu_custom_call.1} parent=1 // pred_fallthru
      _
    // Predicated region
    $region74: #{tpu_custom_call.1} parent=1 // pred_check
      _
    $region75: #{tpu_custom_call.1} parent=1 // pred_check_branch
      %136 = sbr.rel (0) target = $region77
    $region76: #{tpu_custom_call.1} parent=1 // pred_region
      %137 = dma.done [#allocation6], 128
    $region77: #{tpu_custom_call.1} parent=1 // pred_fallthru
      _
    // Predicated region
    $region78: #{tpu_custom_call.1} parent=1 // pred_check
      _
    $region79: #{tpu_custom_call.1} parent=1 // pred_check_branch
      %139 = sbr.rel (0) target = $region81
    $region80: #{tpu_custom_call.1} parent=1 // pred_region
      %140 = dma.done [#allocation6], 16
    $region81: #{tpu_custom_call.1} parent=1 // pred_fallthru
      _
    // Predicated region
    $region82: #{tpu_custom_call.1} parent=1 // pred_check
      _
    $region83: #{tpu_custom_call.1} parent=1 // pred_check_branch
      %142 = sbr.rel (0) target = $region85
    $region84: #{tpu_custom_call.1} parent=1 // pred_region
      %143 = dma.done [#allocation9], 128
    $region85: #{tpu_custom_call.1} parent=1 // pred_fallthru
      _
    // Predicated region
    $region86: #{tpu_custom_call.1} parent=1 // pred_check
      _
    $region87: #{tpu_custom_call.1} parent=1 // pred_check_branch
      %145 = sbr.rel (0) target = $region89
    $region88: #{tpu_custom_call.1} parent=1 // pred_region
      %146 = dma.done [#allocation9], 16
    $region89: #{tpu_custom_call.1} parent=1 // pred_fallthru
      _
    // Predicated region
    $region90: #{tpu_custom_call.1} parent=1 // pred_check
      _
    $region91: #{tpu_custom_call.1} parent=1 // pred_check_branch
      %148 = sbr.rel (0) target = $region93
    $region92: #{tpu_custom_call.1} parent=1 // pred_region
      %149 = dma.done [#allocation12], 16
    $region93: #{tpu_custom_call.1} parent=1 // pred_fallthru
      _
    // Predicated region
    $region94: #{tpu_custom_call.1} parent=1 // pred_check
      _
    $region95: #{tpu_custom_call.1} parent=1 // pred_check_branch
      %151 = sbr.rel (0) target = $region97
    $region96: #{tpu_custom_call.1} parent=1 // pred_region
      %152 = dma.done [#allocation12], 64
    $region97: #{tpu_custom_call.1} parent=1 // pred_fallthru
      _
    // Predicated region
    $region98: #{tpu_custom_call.1} parent=1 // pred_check
      _
    $region99: #{tpu_custom_call.1} parent=1 // pred_check_branch
      %154 = sbr.rel (0) target = $region101
    $region100: #{tpu_custom_call.1} parent=1 // pred_region
      %155 = dma.done [#allocation15], 16
    $region101: #{tpu_custom_call.1} parent=1 // pred_fallthru
      _
    %v157 = vld [vmem:[#allocation2] sm:$0xf]
    %v158 = vld [vmem:[#allocation2 + $0x4] sm:$0xf]
    %v159 = vld [vmem:[%s3] sm:$0xf]
    %v160 = vld [vmem:[%s3 + $0x4] sm:$0xf]
    %v161 = vld [vmem:[%s3 + $0x8] sm:$0xf]
    %v162 = vld [vmem:[%s3 + $0xc] sm:$0xf]
    %v163 = vld [vmem:[%s4] sm:$0x1]
    %v165 = vlaneseq
    %v166 = vshrl.u32 %v165, 7
    %v167 = vsub.s32 0, %v166
    %v168 = vrot.slane %v163, %v167
    %v172 = vunpack.c.l.b16 %v157
    %v173 = vunpack.c.l.b16 %v158
    %v174 = vpack.c.b16 %v173, %v172
    %v179 = vunpack.c.l.b16 %v159
    %v180 = vunpack.c.l.b16 %v160
    %v181 = vunpack.c.l.b16 %v161
    %v182 = vunpack.c.l.b16 %v162
    %v183 = vpack.c.b16 %v180, %v179
    %v184 = vpack.c.b16 %v182, %v181
    %vm187 = vcmask 261120
    %v189 = vsel %vm187, %v174, 0
    %191 = vmatprep.subr.bf16.mxu0 0
    %192 = vmatpush1.bf16.msra.mxu0 %v183
    %193 = vmatprep.subr.bf16.mxu0 0
    %194 = vmatpush1.bf16.msra.mxu0 %v184
    %195 = vmatprep.subr.bf16.mxu0 0
    %196 = vmatpush1.bf16.msra.mxu0 0
    %197 = vmatprep.subr.bf16.mxu0 0
    %198 = vmatpush1.bf16.msra.mxu0 0
    %199 = vmatprep.subr.bf16.mxu0 0
    %200 = vmatpush1.bf16.msra.mxu0 0
    %201 = vmatprep.subr.bf16.mxu0 0
    %202 = vmatpush1.bf16.msra.mxu0 0
    %203 = vmatprep.subr.bf16.mxu0 0
    %204 = vmatpush1.bf16.msra.mxu0 0
    %205 = vmatprep.subr.bf16.mxu0 0
    %206 = vmatpush1.bf16.msra.mxu0 0
    %207 = vmatprep.subr.bf16.mxu0 0
    %208 = vmatpush1.bf16.msra.mxu0 0
    %209 = vmatprep.subr.bf16.mxu0 0
    %210 = vmatpush1.bf16.msra.mxu0 0
    %211 = vmatprep.subr.bf16.mxu0 0
    %212 = vmatpush1.bf16.msra.mxu0 0
    %213 = vmatprep.subr.bf16.mxu0 0
    %214 = vmatpush1.bf16.msra.mxu0 0
    %215 = vmatprep.subr.bf16.mxu0 0
    %216 = vmatpush1.bf16.msra.mxu0 0
    %217 = vmatprep.subr.bf16.mxu0 0
    %218 = vmatpush1.bf16.msra.mxu0 0
    %219 = vmatprep.subr.bf16.mxu0 0
    %220 = vmatpush1.bf16.msra.mxu0 0
    %221 = vmatprep.subr.bf16.mxu0 0
    %222 = vmatpush1.bf16.msra.mxu0 0
    %223 = vmatprep.mubr.bf16.mxu0 0
    %224 = vmatmul.mubr.bf16.gmra.mrb[0].mxu0 %v189
    %v225 = vpop.f32.mrb[0].mxu0
    %v226 = vadd.f32 %v168, %v225
    %v227 = vpop.f32.mrb[0].mxu0
    %v228 = vpop.f32.mrb[0].mxu0
    %v229 = vadd.f32 %v168, %v228
    %v230 = vpop.f32.mrb[0].mxu0
    %231 = vdwg.mxu0
    %v232 = vsub.f32 0.0, %v226
    %v233 = vsub.f32 0.0, %v229
    %v234 = vmul.f32 %v232, 1.442695
    %v235 = vpow.pop %v234
    %v236 = vmul.f32 %v233, 1.442695
    %v237 = vpow.pop %v236
    %v238 = vadd.f32 %v235, 1.0
    %v239 = vadd.f32 %v237, 1.0
    %v240 = vrcp.pop %v238
    %v241 = vrcp.pop %v239
    %v242 = vmul.f32 %v226, %v240
    %v243 = vmul.f32 %v229, %v241
    %v244 = vpack.c.bf16 %v243, %v242
    %v245 = vld [vmem:[%s5] sm:$0xf]
    %v246 = vld [vmem:[%s5 + $0x4] sm:$0xf]
    %v247 = vld [vmem:[%s5 + $0x8] sm:$0xf]
    %v248 = vld [vmem:[%s5 + $0xc] sm:$0xf]
    %v249 = vld [vmem:[%s5 + $0x10] sm:$0xf]
    %v250 = vld [vmem:[%s5 + $0x14] sm:$0xf]
    %v251 = vld [vmem:[%s5 + $0x18] sm:$0xf]
    %v252 = vld [vmem:[%s5 + $0x1c] sm:$0xf]
    %v253 = vld [vmem:[#allocation7] sm:$0x1]
    %v255 = vlaneseq
    %v256 = vshrl.u32 %v255, 7
    %v257 = vsub.s32 0, %v256
    %v258 = vrot.slane %v253, %v257
    %v268 = vunpack.c.l.b16 %v245
    %v269 = vunpack.c.l.b16 %v246
    %v270 = vunpack.c.l.b16 %v247
    %v271 = vunpack.c.l.b16 %v248
    %v272 = vunpack.c.l.b16 %v249
    %v273 = vunpack.c.l.b16 %v250
    %v274 = vunpack.c.l.b16 %v251
    %v275 = vunpack.c.l.b16 %v252
    %v276 = vpack.c.b16 %v269, %v268
    %v277 = vpack.c.b16 %v271, %v270
    %v278 = vpack.c.b16 %v273, %v272
    %v279 = vpack.c.b16 %v275, %v274
    %vm284 = vcmask 523264
    %v286 = vsel %vm284, %v244, 0
    %288 = vmatprep.subr.bf16.mxu0 0
    %289 = vmatpush1.bf16.msra.mxu0 %v276
    %290 = vmatprep.subr.bf16.mxu0 0
    %291 = vmatpush1.bf16.msra.mxu0 %v277
    %292 = vmatprep.subr.bf16.mxu0 0
    %293 = vmatpush1.bf16.msra.mxu0 %v278
    %294 = vmatprep.subr.bf16.mxu0 0
    %295 = vmatpush1.bf16.msra.mxu0 %v279
    %296 = vmatprep.subr.bf16.mxu0 0
    %297 = vmatpush1.bf16.msra.mxu0 0
    %298 = vmatprep.subr.bf16.mxu0 0
    %299 = vmatpush1.bf16.msra.mxu0 0
    %300 = vmatprep.subr.bf16.mxu0 0
    %301 = vmatpush1.bf16.msra.mxu0 0
    %302 = vmatprep.subr.bf16.mxu0 0
    %303 = vmatpush1.bf16.msra.mxu0 0
    %304 = vmatprep.subr.bf16.mxu0 0
    %305 = vmatpush1.bf16.msra.mxu0 0
    %306 = vmatprep.subr.bf16.mxu0 0
    %307 = vmatpush1.bf16.msra.mxu0 0
    %308 = vmatprep.subr.bf16.mxu0 0
    %309 = vmatpush1.bf16.msra.mxu0 0
    %310 = vmatprep.subr.bf16.mxu0 0
    %311 = vmatpush1.bf16.msra.mxu0 0
    %312 = vmatprep.subr.bf16.mxu0 0
    %313 = vmatpush1.bf16.msra.mxu0 0
    %314 = vmatprep.subr.bf16.mxu0 0
    %315 = vmatpush1.bf16.msra.mxu0 0
    %316 = vmatprep.subr.bf16.mxu0 0
    %317 = vmatpush1.bf16.msra.mxu0 0
    %318 = vmatprep.subr.bf16.mxu0 0
    %319 = vmatpush1.bf16.msra.mxu0 0
    %320 = vmatprep.mubr.bf16.mxu0 0
    %321 = vmatmul.mubr.bf16.gmra.mrb[0].mxu0 %v286
    %v322 = vpop.f32.mrb[0].mxu0
    %v323 = vadd.f32 %v258, %v322
    %v324 = vpop.f32.mrb[0].mxu0
    %v325 = vpop.f32.mrb[0].mxu0
    %v326 = vadd.f32 %v258, %v325
    %v327 = vpop.f32.mrb[0].mxu0
    %328 = vdwg.mxu0
    %v329 = vld [vmem:[#allocation5] sm:$0xf]
    %v330 = vld [vmem:[#allocation5 + $0x4] sm:$0xf]
    %v331 = vld [vmem:[#allocation8] sm:$0xf]
    %v332 = vld [vmem:[#allocation8 + $0x4] sm:$0xf]
    %v333 = vpack.c.bf16 %v326, %v323
    %v334 = vld [vmem:[%s8] sm:$0xf]
    %v335 = vld [vmem:[%s8 + $0x4] sm:$0xf]
    %v336 = vld [vmem:[%s8 + $0x8] sm:$0xf]
    %v337 = vld [vmem:[%s8 + $0xc] sm:$0xf]
    %v338 = vld [vmem:[%s8 + $0x10] sm:$0xf]
    %v339 = vld [vmem:[%s8 + $0x14] sm:$0xf]
    %v340 = vld [vmem:[%s8 + $0x18] sm:$0xf]
    %v341 = vld [vmem:[%s8 + $0x1c] sm:$0xf]
    %v350 = vunpack.c.l.b16 %v334
    %v351 = vunpack.c.l.b16 %v335
    %v352 = vunpack.c.l.b16 %v336
    %v353 = vunpack.c.l.b16 %v337
    %v354 = vunpack.c.l.b16 %v338
    %v355 = vunpack.c.l.b16 %v339
    %v356 = vunpack.c.l.b16 %v340
    %v357 = vunpack.c.l.b16 %v341
    %v358 = vpack.c.b16 %v351, %v350
    %v359 = vpack.c.b16 %v353, %v352
    %v360 = vpack.c.b16 %v355, %v354
    %v361 = vpack.c.b16 %v357, %v356
    %v367 = vsel %vm284, %v333, 0
    %369 = vmatprep.subr.bf16.mxu0 0
    %370 = vmatpush1.bf16.msra.mxu0 %v358
    %371 = vmatprep.subr.bf16.mxu0 0
    %372 = vmatpush1.bf16.msra.mxu0 %v359
    %373 = vmatprep.subr.bf16.mxu0 0
    %374 = vmatpush1.bf16.msra.mxu0 %v360
    %375 = vmatprep.subr.bf16.mxu0 0
    %376 = vmatpush1.bf16.msra.mxu0 %v361
    %377 = vmatprep.subr.bf16.mxu0 0
    %378 = vmatpush1.bf16.msra.mxu0 0
    %379 = vmatprep.subr.bf16.mxu0 0
    %380 = vmatpush1.bf16.msra.mxu0 0
    %381 = vmatprep.subr.bf16.mxu0 0
    %382 = vmatpush1.bf16.msra.mxu0 0
    %383 = vmatprep.subr.bf16.mxu0 0
    %384 = vmatpush1.bf16.msra.mxu0 0
    %385 = vmatprep.subr.bf16.mxu0 0
    %386 = vmatpush1.bf16.msra.mxu0 0
    %387 = vmatprep.subr.bf16.mxu0 0
    %388 = vmatpush1.bf16.msra.mxu0 0
    %389 = vmatprep.subr.bf16.mxu0 0
    %390 = vmatpush1.bf16.msra.mxu0 0
    %391 = vmatprep.subr.bf16.mxu0 0
    %392 = vmatpush1.bf16.msra.mxu0 0
    %393 = vmatprep.subr.bf16.mxu0 0
    %394 = vmatpush1.bf16.msra.mxu0 0
    %395 = vmatprep.subr.bf16.mxu0 0
    %396 = vmatpush1.bf16.msra.mxu0 0
    %397 = vmatprep.subr.bf16.mxu0 0
    %398 = vmatpush1.bf16.msra.mxu0 0
    %399 = vmatprep.subr.bf16.mxu0 0
    %400 = vmatpush1.bf16.msra.mxu0 0
    %401 = vmatprep.mubr.bf16.mxu0 0
    %402 = vmatmul.mubr.bf16.gmra.mrb[0].mxu0 %v367
    %v403 = vpop.f32.mrb[0].mxu0
    %v404 = vadd.f32 0.0, %v403
    %v405 = vpop.f32.mrb[0].mxu0
    %v406 = vpop.f32.mrb[0].mxu0
    %v407 = vadd.f32 0.0, %v406
    %v408 = vpop.f32.mrb[0].mxu0
    %409 = vdwg.mxu0
    %v412 = vunpack.c.l.b16 %v329
    %v413 = vunpack.c.l.b16 %v330
    %v414 = vpack.c.b16 %v413, %v412
    %v417 = vunpack.c.l.b16 %v331
    %v418 = vunpack.c.l.b16 %v332
    %v419 = vpack.c.b16 %v418, %v417
    %vm421 = vcmask 130048
    %v423 = vsel %vm421, %v414, 0
    %425 = vmatprep.subr.bf16.mxu0 0
    %426 = vmatpush1.bf16.msra.mxu0 %v419
    %427 = vmatprep.subr.bf16.mxu0 0
    %428 = vmatpush1.bf16.msra.mxu0 0
    %429 = vmatprep.subr.bf16.mxu0 0
    %430 = vmatpush1.bf16.msra.mxu0 0
    %431 = vmatprep.subr.bf16.mxu0 0
    %432 = vmatpush1.bf16.msra.mxu0 0
    %433 = vmatprep.subr.bf16.mxu0 0
    %434 = vmatpush1.bf16.msra.mxu0 0
    %435 = vmatprep.subr.bf16.mxu0 0
    %436 = vmatpush1.bf16.msra.mxu0 0
    %437 = vmatprep.subr.bf16.mxu0 0
    %438 = vmatpush1.bf16.msra.mxu0 0
    %439 = vmatprep.subr.bf16.mxu0 0
    %440 = vmatpush1.bf16.msra.mxu0 0
    %441 = vmatprep.subr.bf16.mxu0 0
    %442 = vmatpush1.bf16.msra.mxu0 0
    %443 = vmatprep.subr.bf16.mxu0 0
    %444 = vmatpush1.bf16.msra.mxu0 0
    %445 = vmatprep.subr.bf16.mxu0 0
    %446 = vmatpush1.bf16.msra.mxu0 0
    %447 = vmatprep.subr.bf16.mxu0 0
    %448 = vmatpush1.bf16.msra.mxu0 0
    %449 = vmatprep.subr.bf16.mxu0 0
    %450 = vmatpush1.bf16.msra.mxu0 0
    %451 = vmatprep.subr.bf16.mxu0 0
    %452 = vmatpush1.bf16.msra.mxu0 0
    %453 = vmatprep.subr.bf16.mxu0 0
    %454 = vmatpush1.bf16.msra.mxu0 0
    %455 = vmatprep.subr.bf16.mxu0 0
    %456 = vmatpush1.bf16.msra.mxu0 0
    %457 = vmatprep.mubr.bf16.mxu0 0
    %458 = vmatmul.mubr.bf16.gmra.mrb[0].mxu0 %v423
    %v459 = vpop.f32.mrb[0].mxu0
    %v460 = vadd.f32 %v404, %v459
    %v461 = vpop.f32.mrb[0].mxu0
    %v462 = vpop.f32.mrb[0].mxu0
    %v463 = vadd.f32 %v407, %v462
    %v464 = vpop.f32.mrb[0].mxu0
    %465 = vdwg.mxu0
    %v466 = vld [vmem:[#allocation10] sm:$0x1]
    %v468 = vlaneseq
    %v469 = vshrl.u32 %v468, 7
    %v470 = vsub.s32 0, %v469
    %v471 = vrot.slane %v466, %v470
    %v473 = vadd.f32 %v460, %v471
    %v474 = vadd.f32 %v463, %v471
    %vm475 = vcmp.ge.f32.partialorder %v473, 0.0
    %vm476 = vcmp.ge.f32.partialorder %v474, 0.0
    %v477 = vmul.f32 %v473, 0.2
    %v478 = vmul.f32 %v474, 0.2
    %v479 = vsel %vm475, %v473, %v477
    %v480 = vsel %vm476, %v474, %v478
    %v481 = vpack.c.bf16 %v480, %v479
    %v482 = vld [vmem:[%s10] sm:$0xf]
    %v483 = vld [vmem:[%s10 + $0x4] sm:$0xf]
    %v484 = vld [vmem:[%s10 + $0x8] sm:$0xf]
    %v485 = vld [vmem:[%s10 + $0xc] sm:$0xf]
    %v486 = vld [vmem:[#allocation11] sm:$0x1]
    %v488 = vlaneseq
    %v489 = vshrl.u32 %v488, 7
    %v490 = vsub.s32 0, %v489
    %v491 = vrot.slane %v486, %v490
    %v497 = vunpack.c.l.b16 %v482
    %v498 = vunpack.c.l.b16 %v483
    %v499 = vunpack.c.l.b16 %v484
    %v500 = vunpack.c.l.b16 %v485
    %v501 = vpack.c.b16 %v498, %v497
    %v502 = vpack.c.b16 %v500, %v499
    %v506 = vsel %vm187, %v481, 0
    %508 = vmatprep.subr.bf16.mxu0 0
    %509 = vmatpush1.bf16.msra.mxu0 %v501
    %510 = vmatprep.subr.bf16.mxu0 0
    %511 = vmatpush1.bf16.msra.mxu0 %v502
    %512 = vmatprep.subr.bf16.mxu0 0
    %513 = vmatpush1.bf16.msra.mxu0 0
    %514 = vmatprep.subr.bf16.mxu0 0
    %515 = vmatpush1.bf16.msra.mxu0 0
    %516 = vmatprep.subr.bf16.mxu0 0
    %517 = vmatpush1.bf16.msra.mxu0 0
    %518 = vmatprep.subr.bf16.mxu0 0
    %519 = vmatpush1.bf16.msra.mxu0 0
    %520 = vmatprep.subr.bf16.mxu0 0
    %521 = vmatpush1.bf16.msra.mxu0 0
    %522 = vmatprep.subr.bf16.mxu0 0
    %523 = vmatpush1.bf16.msra.mxu0 0
    %524 = vmatprep.subr.bf16.mxu0 0
    %525 = vmatpush1.bf16.msra.mxu0 0
    %526 = vmatprep.subr.bf16.mxu0 0
    %527 = vmatpush1.bf16.msra.mxu0 0
    %528 = vmatprep.subr.bf16.mxu0 0
    %529 = vmatpush1.bf16.msra.mxu0 0
    %530 = vmatprep.subr.bf16.mxu0 0
    %531 = vmatpush1.bf16.msra.mxu0 0
    %532 = vmatprep.subr.bf16.mxu0 0
    %533 = vmatpush1.bf16.msra.mxu0 0
    %534 = vmatprep.subr.bf16.mxu0 0
    %535 = vmatpush1.bf16.msra.mxu0 0
    %536 = vmatprep.subr.bf16.mxu0 0
    %537 = vmatpush1.bf16.msra.mxu0 0
    %538 = vmatprep.subr.bf16.mxu0 0
    %539 = vmatpush1.bf16.msra.mxu0 0
    %540 = vmatprep.mubr.bf16.mxu0 0
    %541 = vmatmul.mubr.bf16.gmra.mrb[0].mxu0 %v506
    %v542 = vpop.f32.mrb[0].mxu0
    %v543 = vadd.f32 %v491, %v542
    %v544 = vpop.f32.mrb[0].mxu0
    %v545 = vpop.f32.mrb[0].mxu0
    %v546 = vadd.f32 %v491, %v545
    %v547 = vpop.f32.mrb[0].mxu0
    %548 = vdwg.mxu0
    %vm549 = vcmp.ge.f32.partialorder %v543, 0.0
    %vm550 = vcmp.ge.f32.partialorder %v546, 0.0
    %v551 = vmul.f32 %v543, 0.2
    %v552 = vmul.f32 %v546, 0.2
    %v553 = vsel %vm549, %v543, %v551
    %v554 = vsel %vm550, %v546, %v552
    %v555 = vpack.c.bf16 %v554, %v553
    %v556 = vld [vmem:[%s12] sm:$0xf]
    %v557 = vld [vmem:[%s12 + $0x4] sm:$0xf]
    %v558 = vld [vmem:[%s12 + $0x8] sm:$0xf]
    %v559 = vld [vmem:[%s12 + $0xc] sm:$0xf]
    %v560 = vld [vmem:[%s2] sm:$0xf]
    %v561 = vld [vmem:[%s2 + $0x4] sm:$0xf]
    %v562 = vld [vmem:[#allocation13] sm:$0xf]
    %v565 = vunpack.c.l.b16 %v560
    %v566 = vunpack.c.l.b16 %v561
    %v567 = vpack.c.b16 %v566, %v565
    %vm568 = vcmask 64512
    %v570 = vsel %vm568, %v567, 0
    %vm572 = vcmask 1043456
    %v574 = vsel %vm572, %v562, 0
    %576 = vmatprep.subr.bf16.mxu0 0
    %577 = vmatpush1.bf16.msra.mxu0 %v574
    %578 = vmatprep.subr.bf16.mxu0 0
    %579 = vmatpush1.bf16.msra.mxu0 0
    %580 = vmatprep.subr.bf16.mxu0 0
    %581 = vmatpush1.bf16.msra.mxu0 0
    %582 = vmatprep.subr.bf16.mxu0 0
    %583 = vmatpush1.bf16.msra.mxu0 0
    %584 = vmatprep.subr.bf16.mxu0 0
    %585 = vmatpush1.bf16.msra.mxu0 0
    %586 = vmatprep.subr.bf16.mxu0 0
    %587 = vmatpush1.bf16.msra.mxu0 0
    %588 = vmatprep.subr.bf16.mxu0 0
    %589 = vmatpush1.bf16.msra.mxu0 0
    %590 = vmatprep.subr.bf16.mxu0 0
    %591 = vmatpush1.bf16.msra.mxu0 0
    %592 = vmatprep.subr.bf16.mxu0 0
    %593 = vmatpush1.bf16.msra.mxu0 0
    %594 = vmatprep.subr.bf16.mxu0 0
    %595 = vmatpush1.bf16.msra.mxu0 0
    %596 = vmatprep.subr.bf16.mxu0 0
    %597 = vmatpush1.bf16.msra.mxu0 0
    %598 = vmatprep.subr.bf16.mxu0 0
    %599 = vmatpush1.bf16.msra.mxu0 0
    %600 = vmatprep.subr.bf16.mxu0 0
    %601 = vmatpush1.bf16.msra.mxu0 0
    %602 = vmatprep.subr.bf16.mxu0 0
    %603 = vmatpush1.bf16.msra.mxu0 0
    %604 = vmatprep.subr.bf16.mxu0 0
    %605 = vmatpush1.bf16.msra.mxu0 0
    %606 = vmatprep.subr.bf16.mxu0 0
    %607 = vmatpush1.bf16.msra.mxu0 0
    %608 = vmatprep.mubr.bf16.mxu0 0
    %609 = vmatmul.mubr.bf16.gmra.mrb[0].mxu0 %v570
    %v610 = vpop.f32.mrb[0].mxu0
    %v611 = vadd.f32 0.0, %v610
    %v612 = vpop.f32.mrb[0].mxu0
    %v613 = vpop.f32.mrb[0].mxu0
    %v614 = vadd.f32 0.0, %v613
    %v615 = vpop.f32.mrb[0].mxu0
    %616 = vdwg.mxu0
    %v621 = vunpack.c.l.b16 %v556
    %v622 = vunpack.c.l.b16 %v557
    %v623 = vunpack.c.l.b16 %v558
    %v624 = vunpack.c.l.b16 %v559
    %v625 = vpack.c.b16 %v622, %v621
    %v626 = vpack.c.b16 %v624, %v623
    %v630 = vsel %vm187, %v555, 0
    %632 = vmatprep.subr.bf16.mxu0 0
    %633 = vmatpush1.bf16.msra.mxu0 %v625
    %634 = vmatprep.subr.bf16.mxu0 0
    %635 = vmatpush1.bf16.msra.mxu0 %v626
    %636 = vmatprep.subr.bf16.mxu0 0
    %637 = vmatpush1.bf16.msra.mxu0 0
    %638 = vmatprep.subr.bf16.mxu0 0
    %639 = vmatpush1.bf16.msra.mxu0 0
    %640 = vmatprep.subr.bf16.mxu0 0
    %641 = vmatpush1.bf16.msra.mxu0 0
    %642 = vmatprep.subr.bf16.mxu0 0
    %643 = vmatpush1.bf16.msra.mxu0 0
    %644 = vmatprep.subr.bf16.mxu0 0
    %645 = vmatpush1.bf16.msra.mxu0 0
    %646 = vmatprep.subr.bf16.mxu0 0
    %647 = vmatpush1.bf16.msra.mxu0 0
    %648 = vmatprep.subr.bf16.mxu0 0
    %649 = vmatpush1.bf16.msra.mxu0 0
    %650 = vmatprep.subr.bf16.mxu0 0
    %651 = vmatpush1.bf16.msra.mxu0 0
    %652 = vmatprep.subr.bf16.mxu0 0
    %653 = vmatpush1.bf16.msra.mxu0 0
    %654 = vmatprep.subr.bf16.mxu0 0
    %655 = vmatpush1.bf16.msra.mxu0 0
    %656 = vmatprep.subr.bf16.mxu0 0
    %657 = vmatpush1.bf16.msra.mxu0 0
    %658 = vmatprep.subr.bf16.mxu0 0
    %659 = vmatpush1.bf16.msra.mxu0 0
    %660 = vmatprep.subr.bf16.mxu0 0
    %661 = vmatpush1.bf16.msra.mxu0 0
    %662 = vmatprep.subr.bf16.mxu0 0
    %663 = vmatpush1.bf16.msra.mxu0 0
    %664 = vmatprep.mubr.bf16.mxu0 0
    %665 = vmatmul.mubr.bf16.gmra.mrb[0].mxu0 %v630
    %v666 = vpop.f32.mrb[0].mxu0
    %v667 = vadd.f32 %v611, %v666
    %v668 = vpop.f32.mrb[0].mxu0
    %v669 = vpop.f32.mrb[0].mxu0
    %v670 = vadd.f32 %v614, %v669
    %v671 = vpop.f32.mrb[0].mxu0
    %672 = vdwg.mxu0
    %v673 = vld [vmem:[#allocation14] sm:$0x1]
    %v675 = vlaneseq
    %v676 = vshrl.u32 %v675, 7
    %v677 = vsub.s32 0, %v676
    %v678 = vrot.slane %v673, %v677
    %v680 = vadd.f32 %v667, %v678
    %v681 = vadd.f32 %v670, %v678
    %vm682 = vcmp.ge.f32.partialorder %v680, 0.0
    %vm683 = vcmp.ge.f32.partialorder %v681, 0.0
    %v684 = vmul.f32 %v680, 0.2
    %v685 = vmul.f32 %v681, 0.2
    %v686 = vsel %vm682, %v680, %v684
    %v687 = vsel %vm683, %v681, %v685
    %v688 = vpack.c.bf16 %v687, %v686
    %v689 = vld [vmem:[%s15] sm:$0xf]
    %v690 = vld [vmem:[%s15 + $0x4] sm:$0xf]
    %v691 = vld [vmem:[%s15 + $0x8] sm:$0xf]
    %v692 = vld [vmem:[%s15 + $0xc] sm:$0xf]
    %v693 = vld [vmem:[%s16] sm:$0x1]
    %v695 = vlaneseq
    %v696 = vshrl.u32 %v695, 7
    %v697 = vsub.s32 0, %v696
    %v698 = vrot.slane %v693, %v697
    %v704 = vunpack.c.l.b16 %v689
    %v705 = vunpack.c.l.b16 %v690
    %v706 = vunpack.c.l.b16 %v691
    %v707 = vunpack.c.l.b16 %v692
    %v708 = vpack.c.b16 %v705, %v704
    %v709 = vpack.c.b16 %v707, %v706
    %v713 = vsel %vm187, %v688, 0
    %715 = vmatprep.subr.bf16.mxu0 0
    %716 = vmatpush1.bf16.msra.mxu0 %v708
    %717 = vmatprep.subr.bf16.mxu0 0
    %718 = vmatpush1.bf16.msra.mxu0 %v709
    %719 = vmatprep.subr.bf16.mxu0 0
    %720 = vmatpush1.bf16.msra.mxu0 0
    %721 = vmatprep.subr.bf16.mxu0 0
    %722 = vmatpush1.bf16.msra.mxu0 0
    %723 = vmatprep.subr.bf16.mxu0 0
    %724 = vmatpush1.bf16.msra.mxu0 0
    %725 = vmatprep.subr.bf16.mxu0 0
    %726 = vmatpush1.bf16.msra.mxu0 0
    %727 = vmatprep.subr.bf16.mxu0 0
    %728 = vmatpush1.bf16.msra.mxu0 0
    %729 = vmatprep.subr.bf16.mxu0 0
    %730 = vmatpush1.bf16.msra.mxu0 0
    %731 = vmatprep.subr.bf16.mxu0 0
    %732 = vmatpush1.bf16.msra.mxu0 0
    %733 = vmatprep.subr.bf16.mxu0 0
    %734 = vmatpush1.bf16.msra.mxu0 0
    %735 = vmatprep.subr.bf16.mxu0 0
    %736 = vmatpush1.bf16.msra.mxu0 0
    %737 = vmatprep.subr.bf16.mxu0 0
    %738 = vmatpush1.bf16.msra.mxu0 0
    %739 = vmatprep.subr.bf16.mxu0 0
    %740 = vmatpush1.bf16.msra.mxu0 0
    %741 = vmatprep.subr.bf16.mxu0 0
    %742 = vmatpush1.bf16.msra.mxu0 0
    %743 = vmatprep.subr.bf16.mxu0 0
    %744 = vmatpush1.bf16.msra.mxu0 0
    %745 = vmatprep.subr.bf16.mxu0 0
    %746 = vmatpush1.bf16.msra.mxu0 0
    %747 = vmatprep.mubr.bf16.mxu0 0
    %748 = vmatmul.mubr.bf16.gmra.mrb[0].mxu0 %v713
    %v749 = vpop.f32.mrb[0].mxu0
    %v750 = vadd.f32 %v698, %v749
    %v751 = vpop.f32.mrb[0].mxu0
    %v752 = vpop.f32.mrb[0].mxu0
    %v753 = vadd.f32 %v698, %v752
    %v754 = vpop.f32.mrb[0].mxu0
    %755 = vdwg.mxu0
    %v756 = vmax.f32 %v750, 0.0
    %v757 = vmax.f32 %v753, 0.0
    %758 = vst [vmem:[#allocation16] sm:$0xff] %v756
    %759 = vst [vmem:[#allocation16 + $0x8] sm:$0xff] %v757
    // Predicated region
    $region102: #{tpu_custom_call.1} parent=1 // pred_check
      _
    $region103: #{tpu_custom_call.1} parent=1 // pred_check_branch
      %761 = sbr.rel (0) target = $region105
    $region104: #{tpu_custom_call.1} parent=1 // pred_region
      %s763 = ssub.s32 256, 256
      %764 = vsyncadd [#allocation4], %s763
      %s765 = sshll.u32 [#allocation16], 4
      %s766 = int_to_ptr.vmem [resolvable:$true] %s765
      %771 = dma.vmem_to_hbm [thread:$0]  %s766, 256, %s17, [#allocation4], 128, 128, 8
    $region105: #{tpu_custom_call.1} parent=1 // pred_fallthru
      _
    // Predicated region
    $region106: #{tpu_custom_call.1} parent=1 // pred_check
      _
    $region107: #{tpu_custom_call.1} parent=1 // pred_check_branch
      %773 = sbr.rel (0) target = $region109
    $region108: #{tpu_custom_call.1} parent=1 // pred_region
      %774 = dma.done [#allocation4], 256
    $region109: #{tpu_custom_call.1} parent=1 // pred_fallthru
      _
    %775 = vsyncpa [#allocation3], 1
    %776 = vsyncpa [#allocation6], 1
    %777 = vsyncpa [#allocation9], 1
    %778 = vsyncpa [#allocation12], 1
    %779 = vsyncpa [#allocation15], 1
    %780 = vsyncpa [#allocation4], 1

</llo_original>
